<compile_context>
chip_gen: v5e
topology: v5e:2x2
jax: 0.10.0
libtpu: 0.0.40
codegen_flags: <defaults>
</compile_context>

<pallas_src>
import math
import functools

import jax
import jax.numpy as jnp
from jax.experimental import pallas as pl
from jax.experimental.pallas import tpu as pltpu


# ---------------------------------------------------------------------------
# Config (small, consistent with a RoBERTa layer)
# ---------------------------------------------------------------------------
BATCH = 2
SEQ = 8
HIDDEN = 32
NUM_HEADS = 4
HEAD_DIM = HIDDEN // NUM_HEADS
INTERMEDIATE = 64
LN_EPS = 1e-12

# At production RoBERTa sizes set this to jnp.bfloat16 for the native MXU path
# (accumulation stays f32 via preferred_element_type).  Kept f32 here so the
# 1e-5 allclose parity check against the exact reference passes.
MATMUL_DTYPE = jnp.float32


def _layer_norm(x, gamma, beta, eps):
    mean = jnp.mean(x, axis=-1, keepdims=True)
    centered = x - mean
    var = jnp.mean(centered * centered, axis=-1, keepdims=True)
    inv = jax.lax.rsqrt(var + eps)
    return centered * inv * gamma + beta


def _gelu_exact(x):
    # PyTorch nn.functional.gelu default (erf-based, exact).  Kept exact for
    # bit-level parity with RobertaLayer; tanh-approx would shift work to the
    # (idle-during-FFN) EUP slot at real sizes.
    return 0.5 * x * (1.0 + jax.lax.erf(x * (1.0 / math.sqrt(2.0))))


def _mm(a, b):
    return jnp.dot(a.astype(MATMUL_DTYPE), b.astype(MATMUL_DTYPE),
                   preferred_element_type=jnp.float32)


def _bmm(eq, a, b):
    return jnp.einsum(eq, a.astype(MATMUL_DTYPE), b.astype(MATMUL_DTYPE),
                      preferred_element_type=jnp.float32)


# ---------------------------------------------------------------------------
# Kernel: one batch element per grid step (grid = (B,), "parallel").
# ---------------------------------------------------------------------------
def roberta_layer_kernel(
    x_ref, mask_ref,
    wqkv_ref, bqkv_ref,
    wo_h_ref, bo_ref, ln1_g_ref, ln1_b_ref,
    wi_ref, bi_ref, wo2_ref, bo2_ref, ln2_g_ref, ln2_b_ref,
    out_ref,
    *, num_heads, head_dim, eps,
):
    NH, dh = num_heads, head_dim
    H = NH * dh

    x = x_ref[0]                                        # (S, H)
    S = x.shape[0]

    # --- Fused Q/K/V projection: one (S, H) @ (H, 3H) MXU push ---
    qkv = _mm(x, wqkv_ref[...]) + bqkv_ref[...]         # (S, 3H)
    q2 = qkv[:, 0:H]
    k2 = qkv[:, H:2 * H]
    v2 = qkv[:, 2 * H:3 * H]

    # Head-major stacking via a leading-axis stack (static lane slices only,
    # no minor-dim transposes/reshapes).
    def split_heads(t):                                 # (S, H) -> (NH, S, dh)
        return jnp.stack([t[:, h * dh:(h + 1) * dh] for h in range(NH)], axis=0)

    qh, kh, vh = split_heads(q2), split_heads(k2), split_heads(v2)

    # --- Head-batched attention: one dot_general for scores, one for ctx ---
    scale = 1.0 / math.sqrt(dh)
    scores = _bmm("hqd,hkd->hqk", qh, kh) * scale       # (NH, S, S)
    scores = scores + mask_ref[...]                     # (1,1,S) implicit bcast
    scores = scores - jnp.max(scores, axis=-1, keepdims=True)
    p = jnp.exp(scores)
    denom = jnp.sum(p, axis=-1, keepdims=True)
    inv = pl.reciprocal(denom, approx=True)             # EUP vrcp (free slot)
    inv = inv * (2.0 - denom * inv)                     # one Newton step
    p = p * inv
    # TODO(synk): attention-probs dropout / head_mask are eval-mode identity.

    ctx = _bmm("hqk,hkd->hqd", p, vh)                   # (NH, S, dh)

    # --- ctx -> attention-output dense as ONE head-batched dot_general ---
    # WO is pre-reshaped to (NH, dh, H) in the wrapper; the 4-way tree sum
    # replaces the previous serialized per-head accumulate chain and is
    # flop-identical to a single (S, H) @ (H, H) matmul.
    attn_dense = jnp.sum(_bmm("hsd,hdk->hsk", ctx, wo_h_ref[...]), axis=0)
    attn_dense = attn_dense + bo_ref[...]               # (S, H)

    # --- Attention output: residual + LayerNorm ---
    attn_out = _layer_norm(attn_dense + x, ln1_g_ref[...], ln1_b_ref[...], eps)

    # --- Feed-forward: intermediate dense + exact GELU ---
    inter = _gelu_exact(_mm(attn_out, wi_ref[...]) + bi_ref[...])

    # --- Output dense + residual + LayerNorm ---
    ffn = _mm(inter, wo2_ref[...]) + bo2_ref[...]
    out = _layer_norm(ffn + attn_out, ln2_g_ref[...], ln2_b_ref[...], eps)

    out_ref[...] = out.reshape(1, S, H).astype(out_ref.dtype)


# ---------------------------------------------------------------------------
# Wrapper
# ---------------------------------------------------------------------------
def _const_spec(shape):
    zeros = (0,) * len(shape)
    return pl.BlockSpec(shape, lambda b, _z=zeros: _z)


def roberta_layer(hidden_states, attention_mask, params):
    """hidden_states: (B, S, H) f32, attention_mask: (B, 1, 1, S) additive f32."""
    B, S, H = hidden_states.shape
    I = params["wi"].shape[1]
    NH = NUM_HEADS
    dh = H // NH

    # Fuse QKV weights / biases; reshape WO head-major; make 1-D params (1, N).
    wqkv = jnp.concatenate([params["wq"], params["wk"], params["wv"]], axis=1)
    bqkv = jnp.concatenate([params["bq"], params["bk"], params["bv"]]).reshape(1, 3 * H)
    wo_h = params["wo"].reshape(NH, dh, H)
    bo = params["bo"].reshape(1, H)
    ln1_g = params["ln1_g"].reshape(1, H)
    ln1_b = params["ln1_b"].reshape(1, H)
    bi = params["bi"].reshape(1, I)
    bo2 = params["bo2"].reshape(1, H)
    ln2_g = params["ln2_g"].reshape(1, H)
    ln2_b = params["ln2_b"].reshape(1, H)
    mask3 = attention_mask.reshape(B, 1, S)

    kernel = functools.partial(
        roberta_layer_kernel, num_heads=NH, head_dim=dh, eps=LN_EPS,
    )

    in_specs = [
        pl.BlockSpec((1, S, H), lambda b: (b, 0, 0)),     # x (per-batch block)
        pl.BlockSpec((1, 1, S), lambda b: (b, 0, 0)),     # additive mask
        _const_spec((H, 3 * H)), _const_spec((1, 3 * H)),  # wqkv, bqkv
        _const_spec((NH, dh, H)), _const_spec((1, H)),     # wo (head-major), bo
        _const_spec((1, H)), _const_spec((1, H)),          # ln1 gamma, beta
        _const_spec((H, I)), _const_spec((1, I)),          # wi, bi
        _const_spec((I, H)), _const_spec((1, H)),          # wo2, bo2
        _const_spec((1, H)), _const_spec((1, H)),          # ln2 gamma, beta
    ]
    out_specs = pl.BlockSpec((1, S, H), lambda b: (b, 0, 0))

    # Advisory cost estimate for the XLA scheduler.
    flops = (
        2 * B * S * H * 3 * H       # fused QKV projection
        + 4 * B * S * S * H         # scores + context matmuls (all heads)
        + 2 * B * S * H * H         # attention output dense
        + 4 * B * S * H * I         # FFN in + out
    )
    transcendentals = B * NH * S * S + B * S * I
    bytes_accessed = 4 * (
        2 * B * S * H + B * S
        + H * 3 * H + 3 * H
        + H * H + H
        + 2 * H * I + I + H
        + 4 * H
    )

    return pl.pallas_call(
        kernel,
        grid=(B,),
        out_shape=jax.ShapeDtypeStruct((B, S, H), hidden_states.dtype),
        in_specs=in_specs,
        out_specs=out_specs,
        compiler_params=pltpu.CompilerParams(
            dimension_semantics=("parallel",),   # shards batch over v7x's 2 TCs
            vmem_limit_bytes=32 * 1024 * 1024,
        ),
        cost_estimate=pl.CostEstimate(
            flops=flops,
            transcendentals=transcendentals,
            bytes_accessed=bytes_accessed,
        ),
    )(
        hidden_states, mask3,
        wqkv, bqkv,
        wo_h, bo, ln1_g, ln1_b,
        params["wi"], bi, params["wo2"], bo2, ln2_g, ln2_b,
    )


# ---------------------------------------------------------------------------
# Deterministic synthetic parameters + pure-JAX reference
# ---------------------------------------------------------------------------
def init_params(key):
    """Linear weights stored (in_features, out_features), i.e. pre-transposed
    relative to PyTorch nn.Linear's (out, in) layout."""
    ks = jax.random.split(key, 6)
    std = 0.02
    return {
        "wq": jax.random.normal(ks[0], (HIDDEN, HIDDEN), jnp.float32) * std,
        "bq": jnp.zeros((HIDDEN,), jnp.float32),
        "wk": jax.random.normal(ks[1], (HIDDEN, HIDDEN), jnp.float32) * std,
        "bk": jnp.zeros((HIDDEN,), jnp.float32),
        "wv": jax.random.normal(ks[2], (HIDDEN, HIDDEN), jnp.float32) * std,
        "bv": jnp.zeros((HIDDEN,), jnp.float32),
        "wo": jax.random.normal(ks[3], (HIDDEN, HIDDEN), jnp.float32) * std,
        "bo": jnp.zeros((HIDDEN,), jnp.float32),
        "ln1_g": jnp.ones((HIDDEN,), jnp.float32),
        "ln1_b": jnp.zeros((HIDDEN,), jnp.float32),
        "wi": jax.random.normal(ks[4], (HIDDEN, INTERMEDIATE), jnp.float32) * std,
        "bi": jnp.zeros((INTERMEDIATE,), jnp.float32),
        "wo2": jax.random.normal(ks[5], (INTERMEDIATE, HIDDEN), jnp.float32) * std,
        "bo2": jnp.zeros((HIDDEN,), jnp.float32),
        "ln2_g": jnp.ones((HIDDEN,), jnp.float32),
        "ln2_b": jnp.zeros((HIDDEN,), jnp.float32),
    }


def reference_layer(x, mask, p):
    B, S, H = x.shape
    q = x @ p["wq"] + p["bq"]
    k = x @ p["wk"] + p["bk"]
    v = x @ p["wv"] + p["bv"]

    def split(t):
        return t.reshape(B, S, NUM_HEADS, HEAD_DIM).transpose(0, 2, 1, 3)

    qh, kh, vh = split(q), split(k), split(v)
    scores = jnp.einsum("bhqd,bhkd->bhqk", qh, kh) / math.sqrt(HEAD_DIM)
    scores = scores + mask
    probs = jax.nn.softmax(scores, axis=-1)
    ctx = jnp.einsum("bhqk,bhkd->bhqd", probs, vh)
    ctx = ctx.transpose(0, 2, 1, 3).reshape(B, S, H)

    attn = ctx @ p["wo"] + p["bo"]
    attn = _layer_norm(attn + x, p["ln1_g"], p["ln1_b"], LN_EPS)

    inter = _gelu_exact(attn @ p["wi"] + p["bi"])
    out = inter @ p["wo2"] + p["bo2"]
    out = _layer_norm(out + attn, p["ln2_g"], p["ln2_b"], LN_EPS)
    return out


if __name__ == "__main__":
    key = jax.random.PRNGKey(0)
    k_x, k_p = jax.random.split(key)

    hidden_states = jax.random.normal(k_x, (BATCH, SEQ, HIDDEN), jnp.float32)
    # Additive attention mask (HF convention): 0 = attend, -10000 = masked.
    keep = jnp.ones((BATCH, SEQ), dtype=bool).at[1, 6:].set(False)
    attention_mask = jnp.where(keep, 0.0, -10000.0).astype(jnp.float32)
    attention_mask = attention_mask[:, None, None, :]      # (B, 1, 1, S)

    params = init_params(k_p)

    out = roberta_layer(hidden_states, attention_mask, params)
    out = jax.block_until_ready(out)

    ref = reference_layer(hidden_states, attention_mask, params)
    assert out.shape == (BATCH, SEQ, HIDDEN)
    assert jnp.allclose(out, ref, atol=1e-5, rtol=1e-5), (
        f"max abs err {jnp.max(jnp.abs(out - ref))}"
    )
    print("KERNEL_OK")
</pallas_src>

<mosaic_0001>
module attributes {stable_mosaic.version = 11 : i64} {
  func.func @roberta_layer_kernel(%arg0: i32, %arg1: memref<1x8x32xf32, #tpu.memory_space<vmem>>, %arg2: memref<1x1x8xf32, #tpu.memory_space<vmem>>, %arg3: memref<32x96xf32, #tpu.memory_space<vmem>>, %arg4: memref<1x96xf32, #tpu.memory_space<vmem>>, %arg5: memref<4x8x32xf32, #tpu.memory_space<vmem>>, %arg6: memref<1x32xf32, #tpu.memory_space<vmem>>, %arg7: memref<1x32xf32, #tpu.memory_space<vmem>>, %arg8: memref<1x32xf32, #tpu.memory_space<vmem>>, %arg9: memref<32x64xf32, #tpu.memory_space<vmem>>, %arg10: memref<1x64xf32, #tpu.memory_space<vmem>>, %arg11: memref<64x32xf32, #tpu.memory_space<vmem>>, %arg12: memref<1x32xf32, #tpu.memory_space<vmem>>, %arg13: memref<1x32xf32, #tpu.memory_space<vmem>>, %arg14: memref<1x32xf32, #tpu.memory_space<vmem>>, %arg15: memref<1x8x32xf32, #tpu.memory_space<vmem>>) attributes {dimension_semantics = [#tpu.dimension_semantics<parallel>], iteration_bounds = array<i64: 2>, scalar_prefetch = 0 : i64, scratch_operands = 0 : i64, tpu.core_type = #tpu.core_type<tc>, window_params = [{transform_indices = @transform_0, window_bounds = array<i64: 1, 8, 32>}, {transform_indices = @transform_1, window_bounds = array<i64: 1, 1, 8>}, {pipeline_mode = #tpu.pipeline_mode<synchronous>, transform_indices = @transform_2, window_bounds = array<i64: 32, 96>}, {pipeline_mode = #tpu.pipeline_mode<synchronous>, transform_indices = @transform_3, window_bounds = array<i64: 1, 96>}, {pipeline_mode = #tpu.pipeline_mode<synchronous>, transform_indices = @transform_4, window_bounds = array<i64: 4, 8, 32>}, {pipeline_mode = #tpu.pipeline_mode<synchronous>, transform_indices = @transform_5, window_bounds = array<i64: 1, 32>}, {pipeline_mode = #tpu.pipeline_mode<synchronous>, transform_indices = @transform_6, window_bounds = array<i64: 1, 32>}, {pipeline_mode = #tpu.pipeline_mode<synchronous>, transform_indices = @transform_7, window_bounds = array<i64: 1, 32>}, {pipeline_mode = #tpu.pipeline_mode<synchronous>, transform_indices = @transform_8, window_bounds = array<i64: 32, 64>}, {pipeline_mode = #tpu.pipeline_mode<synchronous>, transform_indices = @transform_9, window_bounds = array<i64: 1, 64>}, {pipeline_mode = #tpu.pipeline_mode<synchronous>, transform_indices = @transform_10, window_bounds = array<i64: 64, 32>}, {pipeline_mode = #tpu.pipeline_mode<synchronous>, transform_indices = @transform_11, window_bounds = array<i64: 1, 32>}, {pipeline_mode = #tpu.pipeline_mode<synchronous>, transform_indices = @transform_12, window_bounds = array<i64: 1, 32>}, {pipeline_mode = #tpu.pipeline_mode<synchronous>, transform_indices = @transform_13, window_bounds = array<i64: 1, 32>}, {transform_indices = @transform_14, window_bounds = array<i64: 1, 8, 32>}]} {
    %c0 = arith.constant 0 : index
    %c0_0 = arith.constant 0 : index
    %c0_1 = arith.constant 0 : index
    %0 = vector.load %arg1[%c0, %c0_0, %c0_1] : memref<1x8x32xf32, #tpu.memory_space<vmem>>, vector<1x8x32xf32>
    %1 = vector.shape_cast %0 : vector<1x8x32xf32> to vector<8x32xf32>
    %c0_2 = arith.constant 0 : index
    %c0_3 = arith.constant 0 : index
    %2 = vector.load %arg3[%c0_2, %c0_3] : memref<32x96xf32, #tpu.memory_space<vmem>>, vector<32x96xf32>
    %cst = arith.constant dense<0.000000e+00> : vector<8x96xf32>
    %3 = tpu.matmul %1, %2, %cst {dimension_numbers = #tpu.dot_dimension_numbers<[1], [0], [0], [1], [0, 0, 1, 1], [], []>} : vector<8x32xf32>, vector<32x96xf32>, vector<8x96xf32> -> vector<8x96xf32>
    %c0_4 = arith.constant 0 : index
    %c0_5 = arith.constant 0 : index
    %4 = vector.load %arg4[%c0_4, %c0_5] : memref<1x96xf32, #tpu.memory_space<vmem>>, vector<1x96xf32>
    %5 = vector.broadcast %4 : vector<1x96xf32> to vector<8x96xf32>
    %6 = arith.addf %3, %5 : vector<8x96xf32>
    %7 = vector.extract_strided_slice %6 {offsets = [0, 0], sizes = [8, 32], strides = [1, 1]} : vector<8x96xf32> to vector<8x32xf32>
    %8 = vector.extract_strided_slice %6 {offsets = [0, 32], sizes = [8, 32], strides = [1, 1]} : vector<8x96xf32> to vector<8x32xf32>
    %9 = vector.extract_strided_slice %6 {offsets = [0, 64], sizes = [8, 32], strides = [1, 1]} : vector<8x96xf32> to vector<8x32xf32>
    %10 = vector.extract_strided_slice %7 {offsets = [0, 0], sizes = [8, 8], strides = [1, 1]} : vector<8x32xf32> to vector<8x8xf32>
    %11 = vector.extract_strided_slice %7 {offsets = [0, 8], sizes = [8, 8], strides = [1, 1]} : vector<8x32xf32> to vector<8x8xf32>
    %12 = vector.extract_strided_slice %7 {offsets = [0, 16], sizes = [8, 8], strides = [1, 1]} : vector<8x32xf32> to vector<8x8xf32>
    %13 = vector.extract_strided_slice %7 {offsets = [0, 24], sizes = [8, 8], strides = [1, 1]} : vector<8x32xf32> to vector<8x8xf32>
    %14 = vector.shape_cast %10 : vector<8x8xf32> to vector<1x8x8xf32>
    %15 = vector.shape_cast %11 : vector<8x8xf32> to vector<1x8x8xf32>
    %16 = vector.shape_cast %12 : vector<8x8xf32> to vector<1x8x8xf32>
    %17 = vector.shape_cast %13 : vector<8x8xf32> to vector<1x8x8xf32>
    %18 = tpu.concatenate %14, %15, %16, %17 in 0 : vector<1x8x8xf32>, vector<1x8x8xf32>, vector<1x8x8xf32>, vector<1x8x8xf32> -> vector<4x8x8xf32>
    %19 = vector.extract_strided_slice %8 {offsets = [0, 0], sizes = [8, 8], strides = [1, 1]} : vector<8x32xf32> to vector<8x8xf32>
    %20 = vector.extract_strided_slice %8 {offsets = [0, 8], sizes = [8, 8], strides = [1, 1]} : vector<8x32xf32> to vector<8x8xf32>
    %21 = vector.extract_strided_slice %8 {offsets = [0, 16], sizes = [8, 8], strides = [1, 1]} : vector<8x32xf32> to vector<8x8xf32>
    %22 = vector.extract_strided_slice %8 {offsets = [0, 24], sizes = [8, 8], strides = [1, 1]} : vector<8x32xf32> to vector<8x8xf32>
    %23 = vector.shape_cast %19 : vector<8x8xf32> to vector<1x8x8xf32>
    %24 = vector.shape_cast %20 : vector<8x8xf32> to vector<1x8x8xf32>
    %25 = vector.shape_cast %21 : vector<8x8xf32> to vector<1x8x8xf32>
    %26 = vector.shape_cast %22 : vector<8x8xf32> to vector<1x8x8xf32>
    %27 = tpu.concatenate %23, %24, %25, %26 in 0 : vector<1x8x8xf32>, vector<1x8x8xf32>, vector<1x8x8xf32>, vector<1x8x8xf32> -> vector<4x8x8xf32>
    %28 = vector.extract_strided_slice %9 {offsets = [0, 0], sizes = [8, 8], strides = [1, 1]} : vector<8x32xf32> to vector<8x8xf32>
    %29 = vector.extract_strided_slice %9 {offsets = [0, 8], sizes = [8, 8], strides = [1, 1]} : vector<8x32xf32> to vector<8x8xf32>
    %30 = vector.extract_strided_slice %9 {offsets = [0, 16], sizes = [8, 8], strides = [1, 1]} : vector<8x32xf32> to vector<8x8xf32>
    %31 = vector.extract_strided_slice %9 {offsets = [0, 24], sizes = [8, 8], strides = [1, 1]} : vector<8x32xf32> to vector<8x8xf32>
    %32 = vector.shape_cast %28 : vector<8x8xf32> to vector<1x8x8xf32>
    %33 = vector.shape_cast %29 : vector<8x8xf32> to vector<1x8x8xf32>
    %34 = vector.shape_cast %30 : vector<8x8xf32> to vector<1x8x8xf32>
    %35 = vector.shape_cast %31 : vector<8x8xf32> to vector<1x8x8xf32>
    %36 = tpu.concatenate %32, %33, %34, %35 in 0 : vector<1x8x8xf32>, vector<1x8x8xf32>, vector<1x8x8xf32>, vector<1x8x8xf32> -> vector<4x8x8xf32>
    "tpu.trace_start"() <{level = 10 : i32, message = "hqd,hkd->hqk"}> : () -> ()
    %cst_6 = arith.constant dense<0.000000e+00> : vector<4x8x8xf32>
    %37 = tpu.matmul %18, %27, %cst_6 {dimension_numbers = #tpu.dot_dimension_numbers<[2], [2], [1], [1], [0, 0, 0, 1, 1, 1], [0], [0]>} : vector<4x8x8xf32>, vector<4x8x8xf32>, vector<4x8x8xf32> -> vector<4x8x8xf32>
    "tpu.trace_stop"() : () -> ()
    %cst_7 = arith.constant 0.353553385 : f32
    %38 = vector.broadcast %cst_7 : f32 to vector<4x8x8xf32>
    %39 = arith.mulf %37, %38 : vector<4x8x8xf32>
    %c0_8 = arith.constant 0 : index
    %c0_9 = arith.constant 0 : index
    %c0_10 = arith.constant 0 : index
    %40 = vector.load %arg2[%c0_8, %c0_9, %c0_10] : memref<1x1x8xf32, #tpu.memory_space<vmem>>, vector<1x1x8xf32>
    %41 = vector.broadcast %40 : vector<1x1x8xf32> to vector<4x8x8xf32>
    %42 = arith.addf %39, %41 : vector<4x8x8xf32>
    %cst_11 = arith.constant dense<0xFF800000> : vector<4x8xf32>
    %43 = vector.multi_reduction <maximumf>, %42, %cst_11 [2] : vector<4x8x8xf32> to vector<4x8xf32>
    %44 = vector.shape_cast %43 : vector<4x8xf32> to vector<4x8x1xf32>
    %45 = vector.broadcast %44 : vector<4x8x1xf32> to vector<4x8x8xf32>
    %46 = arith.subf %42, %45 : vector<4x8x8xf32>
    %47 = math.exp %46 : vector<4x8x8xf32>
    %cst_12 = arith.constant dense<0.000000e+00> : vector<4x8xf32>
    %48 = vector.multi_reduction <add>, %47, %cst_12 [2] : vector<4x8x8xf32> to vector<4x8xf32>
    %49 = vector.shape_cast %48 : vector<4x8xf32> to vector<4x8x1xf32>
    %50 = tpu.reciprocal %49 {approx = true} : vector<4x8x1xf32> -> vector<4x8x1xf32>
    %51 = arith.mulf %49, %50 : vector<4x8x1xf32>
    %cst_13 = arith.constant 2.000000e+00 : f32
    %52 = vector.broadcast %cst_13 : f32 to vector<4x8x1xf32>
    %53 = arith.subf %52, %51 : vector<4x8x1xf32>
    %54 = arith.mulf %50, %53 : vector<4x8x1xf32>
    %55 = vector.broadcast %54 : vector<4x8x1xf32> to vector<4x8x8xf32>
    %56 = arith.mulf %47, %55 : vector<4x8x8xf32>
    "tpu.trace_start"() <{level = 10 : i32, message = "hqk,hkd->hqd"}> : () -> ()
    %cst_14 = arith.constant dense<0.000000e+00> : vector<4x8x8xf32>
    %57 = tpu.matmul %56, %36, %cst_14 {dimension_numbers = #tpu.dot_dimension_numbers<[2], [1], [1], [2], [0, 0, 0, 1, 1, 2], [0], [0]>} : vector<4x8x8xf32>, vector<4x8x8xf32>, vector<4x8x8xf32> -> vector<4x8x8xf32>
    "tpu.trace_stop"() : () -> ()
    %c0_15 = arith.constant 0 : index
    %c0_16 = arith.constant 0 : index
    %c0_17 = arith.constant 0 : index
    %58 = vector.load %arg5[%c0_15, %c0_16, %c0_17] : memref<4x8x32xf32, #tpu.memory_space<vmem>>, vector<4x8x32xf32>
    "tpu.trace_start"() <{level = 10 : i32, message = "hsd,hdk->hsk"}> : () -> ()
    %cst_18 = arith.constant dense<0.000000e+00> : vector<4x8x32xf32>
    %59 = tpu.matmul %57, %58, %cst_18 {dimension_numbers = #tpu.dot_dimension_numbers<[2], [1], [1], [2], [0, 0, 0, 1, 1, 2], [0], [0]>} : vector<4x8x8xf32>, vector<4x8x32xf32>, vector<4x8x32xf32> -> vector<4x8x32xf32>
    "tpu.trace_stop"() : () -> ()
    %cst_19 = arith.constant dense<0.000000e+00> : vector<8x32xf32>
    %60 = vector.multi_reduction <add>, %59, %cst_19 [0] : vector<4x8x32xf32> to vector<8x32xf32>
    %c0_20 = arith.constant 0 : index
    %c0_21 = arith.constant 0 : index
    %61 = vector.load %arg6[%c0_20, %c0_21] : memref<1x32xf32, #tpu.memory_space<vmem>>, vector<1x32xf32>
    %62 = vector.broadcast %61 : vector<1x32xf32> to vector<8x32xf32>
    %63 = arith.addf %60, %62 : vector<8x32xf32>
    %64 = arith.addf %63, %1 : vector<8x32xf32>
    %c0_22 = arith.constant 0 : index
    %c0_23 = arith.constant 0 : index
    %65 = vector.load %arg7[%c0_22, %c0_23] : memref<1x32xf32, #tpu.memory_space<vmem>>, vector<1x32xf32>
    %c0_24 = arith.constant 0 : index
    %c0_25 = arith.constant 0 : index
    %66 = vector.load %arg8[%c0_24, %c0_25] : memref<1x32xf32, #tpu.memory_space<vmem>>, vector<1x32xf32>
    %cst_26 = arith.constant dense<0.000000e+00> : vector<8xf32>
    %67 = vector.multi_reduction <add>, %64, %cst_26 [1] : vector<8x32xf32> to vector<8xf32>
    %68 = vector.shape_cast %67 : vector<8xf32> to vector<8x1xf32>
    %cst_27 = arith.constant 3.200000e+01 : f32
    %69 = vector.broadcast %cst_27 : f32 to vector<8x1xf32>
    %70 = arith.divf %68, %69 : vector<8x1xf32>
    %71 = vector.broadcast %70 : vector<8x1xf32> to vector<8x32xf32>
    %72 = arith.subf %64, %71 : vector<8x32xf32>
    %73 = arith.mulf %72, %72 : vector<8x32xf32>
    %cst_28 = arith.constant dense<0.000000e+00> : vector<8xf32>
    %74 = vector.multi_reduction <add>, %73, %cst_28 [1] : vector<8x32xf32> to vector<8xf32>
    %75 = vector.shape_cast %74 : vector<8xf32> to vector<8x1xf32>
    %cst_29 = arith.constant 3.200000e+01 : f32
    %76 = vector.broadcast %cst_29 : f32 to vector<8x1xf32>
    %77 = arith.divf %75, %76 : vector<8x1xf32>
    %cst_30 = arith.constant 9.99999996E-13 : f32
    %78 = vector.broadcast %cst_30 : f32 to vector<8x1xf32>
    %79 = arith.addf %77, %78 : vector<8x1xf32>
    %80 = math.rsqrt %79 : vector<8x1xf32>
    %81 = vector.broadcast %80 : vector<8x1xf32> to vector<8x32xf32>
    %82 = arith.mulf %72, %81 : vector<8x32xf32>
    %83 = vector.broadcast %65 : vector<1x32xf32> to vector<8x32xf32>
    %84 = arith.mulf %82, %83 : vector<8x32xf32>
    %85 = vector.broadcast %66 : vector<1x32xf32> to vector<8x32xf32>
    %86 = arith.addf %84, %85 : vector<8x32xf32>
    %c0_31 = arith.constant 0 : index
    %c0_32 = arith.constant 0 : index
    %87 = vector.load %arg9[%c0_31, %c0_32] : memref<32x64xf32, #tpu.memory_space<vmem>>, vector<32x64xf32>
    %cst_33 = arith.constant dense<0.000000e+00> : vector<8x64xf32>
    %88 = tpu.matmul %86, %87, %cst_33 {dimension_numbers = #tpu.dot_dimension_numbers<[1], [0], [0], [1], [0, 0, 1, 1], [], []>} : vector<8x32xf32>, vector<32x64xf32>, vector<8x64xf32> -> vector<8x64xf32>
    %c0_34 = arith.constant 0 : index
    %c0_35 = arith.constant 0 : index
    %89 = vector.load %arg10[%c0_34, %c0_35] : memref<1x64xf32, #tpu.memory_space<vmem>>, vector<1x64xf32>
    %90 = vector.broadcast %89 : vector<1x64xf32> to vector<8x64xf32>
    %91 = arith.addf %88, %90 : vector<8x64xf32>
    %cst_36 = arith.constant 5.000000e-01 : f32
    %92 = vector.broadcast %cst_36 : f32 to vector<8x64xf32>
    %93 = arith.mulf %92, %91 : vector<8x64xf32>
    %cst_37 = arith.constant 0.707106769 : f32
    %94 = vector.broadcast %cst_37 : f32 to vector<8x64xf32>
    %95 = arith.mulf %91, %94 : vector<8x64xf32>
    %96 = math.erf %95 : vector<8x64xf32>
    %cst_38 = arith.constant 1.000000e+00 : f32
    %97 = vector.broadcast %cst_38 : f32 to vector<8x64xf32>
    %98 = arith.addf %97, %96 : vector<8x64xf32>
    %99 = arith.mulf %93, %98 : vector<8x64xf32>
    %c0_39 = arith.constant 0 : index
    %c0_40 = arith.constant 0 : index
    %100 = vector.load %arg11[%c0_39, %c0_40] : memref<64x32xf32, #tpu.memory_space<vmem>>, vector<64x32xf32>
    %cst_41 = arith.constant dense<0.000000e+00> : vector<8x32xf32>
    %101 = tpu.matmul %99, %100, %cst_41 {dimension_numbers = #tpu.dot_dimension_numbers<[1], [0], [0], [1], [0, 0, 1, 1], [], []>} : vector<8x64xf32>, vector<64x32xf32>, vector<8x32xf32> -> vector<8x32xf32>
    %c0_42 = arith.constant 0 : index
    %c0_43 = arith.constant 0 : index
    %102 = vector.load %arg12[%c0_42, %c0_43] : memref<1x32xf32, #tpu.memory_space<vmem>>, vector<1x32xf32>
    %103 = vector.broadcast %102 : vector<1x32xf32> to vector<8x32xf32>
    %104 = arith.addf %101, %103 : vector<8x32xf32>
    %105 = arith.addf %104, %86 : vector<8x32xf32>
    %c0_44 = arith.constant 0 : index
    %c0_45 = arith.constant 0 : index
    %106 = vector.load %arg13[%c0_44, %c0_45] : memref<1x32xf32, #tpu.memory_space<vmem>>, vector<1x32xf32>
    %c0_46 = arith.constant 0 : index
    %c0_47 = arith.constant 0 : index
    %107 = vector.load %arg14[%c0_46, %c0_47] : memref<1x32xf32, #tpu.memory_space<vmem>>, vector<1x32xf32>
    %cst_48 = arith.constant dense<0.000000e+00> : vector<8xf32>
    %108 = vector.multi_reduction <add>, %105, %cst_48 [1] : vector<8x32xf32> to vector<8xf32>
    %109 = vector.shape_cast %108 : vector<8xf32> to vector<8x1xf32>
    %cst_49 = arith.constant 3.200000e+01 : f32
    %110 = vector.broadcast %cst_49 : f32 to vector<8x1xf32>
    %111 = arith.divf %109, %110 : vector<8x1xf32>
    %112 = vector.broadcast %111 : vector<8x1xf32> to vector<8x32xf32>
    %113 = arith.subf %105, %112 : vector<8x32xf32>
    %114 = arith.mulf %113, %113 : vector<8x32xf32>
    %cst_50 = arith.constant dense<0.000000e+00> : vector<8xf32>
    %115 = vector.multi_reduction <add>, %114, %cst_50 [1] : vector<8x32xf32> to vector<8xf32>
    %116 = vector.shape_cast %115 : vector<8xf32> to vector<8x1xf32>
    %cst_51 = arith.constant 3.200000e+01 : f32
    %117 = vector.broadcast %cst_51 : f32 to vector<8x1xf32>
    %118 = arith.divf %116, %117 : vector<8x1xf32>
    %cst_52 = arith.constant 9.99999996E-13 : f32
    %119 = vector.broadcast %cst_52 : f32 to vector<8x1xf32>
    %120 = arith.addf %118, %119 : vector<8x1xf32>
    %121 = math.rsqrt %120 : vector<8x1xf32>
    %122 = vector.broadcast %121 : vector<8x1xf32> to vector<8x32xf32>
    %123 = arith.mulf %113, %122 : vector<8x32xf32>
    %124 = vector.broadcast %106 : vector<1x32xf32> to vector<8x32xf32>
    %125 = arith.mulf %123, %124 : vector<8x32xf32>
    %126 = vector.broadcast %107 : vector<1x32xf32> to vector<8x32xf32>
    %127 = arith.addf %125, %126 : vector<8x32xf32>
    %128 = vector.shape_cast %127 : vector<8x32xf32> to vector<1x8x32xf32>
    %c0_53 = arith.constant 0 : index
    %c0_54 = arith.constant 0 : index
    %c0_55 = arith.constant 0 : index
    %129 = vector.load %arg15[%c0_53, %c0_54, %c0_55] : memref<1x8x32xf32, #tpu.memory_space<vmem>>, vector<1x8x32xf32>
    tpu.vector_store %arg15[%c0_53, %c0_54, %c0_55], %128 {strides = array<i32>} : memref<1x8x32xf32, #tpu.memory_space<vmem>>, vector<1x8x32xf32>,
    return
  }
  func.func @transform_0(%arg0: i32) -> (i32, i32, i32) {
    %c0_i32 = arith.constant 0 : i32
    %c0_i32_0 = arith.constant 0 : i32
    %c0_i32_1 = arith.constant 0 : i32
    return %arg0, %c0_i32, %c0_i32_0 : i32, i32, i32
  }
  func.func @transform_1(%arg0: i32) -> (i32, i32, i32) {
    %c0_i32 = arith.constant 0 : i32
    %c0_i32_0 = arith.constant 0 : i32
    %c0_i32_1 = arith.constant 0 : i32
    return %arg0, %c0_i32, %c0_i32_0 : i32, i32, i32
  }
  func.func @transform_2(%arg0: i32) -> (i32, i32) {
    %c0_i32 = arith.constant 0 : i32
    %c0_i32_0 = arith.constant 0 : i32
    %c0_i32_1 = arith.constant 0 : i32
    return %c0_i32, %c0_i32_0 : i32, i32
  }
  func.func @transform_3(%arg0: i32) -> (i32, i32) {
    %c0_i32 = arith.constant 0 : i32
    %c0_i32_0 = arith.constant 0 : i32
    %c0_i32_1 = arith.constant 0 : i32
    return %c0_i32, %c0_i32_0 : i32, i32
  }
  func.func @transform_4(%arg0: i32) -> (i32, i32, i32) {
    %c0_i32 = arith.constant 0 : i32
    %c0_i32_0 = arith.constant 0 : i32
    %c0_i32_1 = arith.constant 0 : i32
    %c0_i32_2 = arith.constant 0 : i32
    return %c0_i32, %c0_i32_0, %c0_i32_1 : i32, i32, i32
  }
  func.func @transform_5(%arg0: i32) -> (i32, i32) {
    %c0_i32 = arith.constant 0 : i32
    %c0_i32_0 = arith.constant 0 : i32
    %c0_i32_1 = arith.constant 0 : i32
    return %c0_i32, %c0_i32_0 : i32, i32
  }
  func.func @transform_6(%arg0: i32) -> (i32, i32) {
    %c0_i32 = arith.constant 0 : i32
    %c0_i32_0 = arith.constant 0 : i32
    %c0_i32_1 = arith.constant 0 : i32
    return %c0_i32, %c0_i32_0 : i32, i32
  }
  func.func @transform_7(%arg0: i32) -> (i32, i32) {
    %c0_i32 = arith.constant 0 : i32
    %c0_i32_0 = arith.constant 0 : i32
    %c0_i32_1 = arith.constant 0 : i32
    return %c0_i32, %c0_i32_0 : i32, i32
  }
  func.func @transform_8(%arg0: i32) -> (i32, i32) {
    %c0_i32 = arith.constant 0 : i32
    %c0_i32_0 = arith.constant 0 : i32
    %c0_i32_1 = arith.constant 0 : i32
    return %c0_i32, %c0_i32_0 : i32, i32
  }
  func.func @transform_9(%arg0: i32) -> (i32, i32) {
    %c0_i32 = arith.constant 0 : i32
    %c0_i32_0 = arith.constant 0 : i32
    %c0_i32_1 = arith.constant 0 : i32
    return %c0_i32, %c0_i32_0 : i32, i32
  }
  func.func @transform_10(%arg0: i32) -> (i32, i32) {
    %c0_i32 = arith.constant 0 : i32
    %c0_i32_0 = arith.constant 0 : i32
    %c0_i32_1 = arith.constant 0 : i32
    return %c0_i32, %c0_i32_0 : i32, i32
  }
  func.func @transform_11(%arg0: i32) -> (i32, i32) {
    %c0_i32 = arith.constant 0 : i32
    %c0_i32_0 = arith.constant 0 : i32
    %c0_i32_1 = arith.constant 0 : i32
    return %c0_i32, %c0_i32_0 : i32, i32
  }
  func.func @transform_12(%arg0: i32) -> (i32, i32) {
    %c0_i32 = arith.constant 0 : i32
    %c0_i32_0 = arith.constant 0 : i32
    %c0_i32_1 = arith.constant 0 : i32
    return %c0_i32, %c0_i32_0 : i32, i32
  }
  func.func @transform_13(%arg0: i32) -> (i32, i32) {
    %c0_i32 = arith.constant 0 : i32
    %c0_i32_0 = arith.constant 0 : i32
    %c0_i32_1 = arith.constant 0 : i32
    return %c0_i32, %c0_i32_0 : i32, i32
  }
  func.func @transform_14(%arg0: i32) -> (i32, i32, i32) {
    %c0_i32 = arith.constant 0 : i32
    %c0_i32_0 = arith.constant 0 : i32
    %c0_i32_1 = arith.constant 0 : i32
    return %arg0, %c0_i32, %c0_i32_0 : i32, i32, i32
  }
}

</mosaic_0001>

<llo_original>
// kernel: tpu_custom_call.1
$region0: #{tpu_custom_call.1}
  #allocation0 [shape = 'u32[]', space=smem, size = 0x4, offset = 0x4, fixed_abs, tag = 'smem constant byte address 0x4 - core index']
  #allocation1 [shape = 'u32[72,128]{1,0:T(1,128)}', space=vmem, size = 0x9000, scoped, tag = 'internal scratch']
  %s0 = inlined_call_operand.hbm [shape: f32[2,8,32], index: 0, kind: input, shape index: {}]
  %s1 = inlined_call_operand.hbm [shape: f32[2,1,8], index: 1, kind: input, shape index: {}]
  %s2 = inlined_call_operand.vmem [shape: f32[32,96], index: 2, kind: input, shape index: {}]
  %s3 = inlined_call_operand.vmem [shape: f32[1,96], index: 3, kind: input, shape index: {}]
  %s4 = inlined_call_operand.vmem [shape: f32[4,8,32], index: 4, kind: input, shape index: {}]
  %s5 = inlined_call_operand.vmem [shape: f32[1,32], index: 5, kind: input, shape index: {}]
  %s6 = inlined_call_operand.vmem [shape: f32[1,32], index: 6, kind: input, shape index: {}]
  %s7 = inlined_call_operand.vmem [shape: f32[1,32], index: 7, kind: input, shape index: {}]
  %s8 = inlined_call_operand.vmem [shape: f32[32,64], index: 8, kind: input, shape index: {}]
  %s9 = inlined_call_operand.vmem [shape: f32[1,64], index: 9, kind: input, shape index: {}]
  %s10 = inlined_call_operand.vmem [shape: f32[64,32], index: 10, kind: input, shape index: {}]
  %s11 = inlined_call_operand.vmem [shape: f32[1,32], index: 11, kind: input, shape index: {}]
  %s12 = inlined_call_operand.vmem [shape: f32[1,32], index: 12, kind: input, shape index: {}]
  %s13 = inlined_call_operand.vmem [shape: f32[1,32], index: 13, kind: input, shape index: {}]
  %s14 = inlined_call_operand.hbm [shape: f32[2,8,32], index: 14, kind: output, shape index: {}]
  %s15 = sld [smem:[#allocation0]]
  $region97: #{tpu_custom_call.1} parent=0
    _
  %s17 = ssub.s32 1, %s15
  %s18 = scalar_select 0, %s17, %s15
  $region1: #{tpu_custom_call.1} parent=0
    #allocation2 [shape = 'u8[8192]{0}', space=vmem, size = 0x2000, scoped, tag = 'input window, operand 0']
    #allocation3 [shape = 's32[2]{0}', space=sflag, size = 0x8, scoped, tag = 'scoped memory for tpu_custom_call.1']
    #allocation4 [shape = 's32[2]{0}', space=sflag, size = 0x8, scoped, tag = 'scoped memory for tpu_custom_call.1']
    #allocation5 [shape = 'u8[1024]{0}', space=vmem, size = 0x400, scoped, tag = 'input window, operand 1']
    #allocation6 [shape = 's32[2]{0}', space=sflag, size = 0x8, scoped, tag = 'scoped memory for tpu_custom_call.1']
    #allocation7 [shape = 'u8[8192]{0}', space=vmem, size = 0x2000, scoped, tag = 'output window, operand 0']
    %19 = vsyncpa [#allocation3], 0
    %s20 = scalar_lea.sflag [#allocation3], 1
    %21 = vsyncpa %s20, 0
    %22 = vsyncpa [#allocation6], 0
    %s23 = scalar_lea.sflag [#allocation6], 1
    %24 = vsyncpa %s23, 0
    %25 = vsyncpa [#allocation4], 0
    %s26 = scalar_lea.sflag [#allocation4], 1
    %27 = vsyncpa %s26, 0
    loop: start=0, step=1, limit=4
    $region2: #{tpu_custom_call.1} parent=1 // loop_pre_header
      _
    $region3: #{tpu_custom_call.1} parent=1 // loop_header
      %s29 = sphi 0, %s33
      %p30 = scmp.ge.s32.totalorder %s29, 4
      %s39 = sphi 0, %s41
      %s42 = sphi 0, %s39
      %s43 = sphi 0, %s42
      %s59 = sphi 0, %s43
      %s65 = sphi 0, %s67
      %s68 = sphi 0, %s65
      %s69 = sphi 0, %s68
      %s85 = sphi 0, %s69
      %s89 = sphi 0, %s89
      %s91 = sphi 0, %s89
      %s92 = sphi 0, %s91
      %s106 = sphi 0, %s92
      %s110 = sphi 0, %s110
      %s112 = sphi 0, %s110
      %s113 = sphi 0, %s112
      %s127 = sphi 0, %s113
      %s131 = sphi 0, %s131
      %s133 = sphi 0, %s131
      %s134 = sphi 0, %s133
      %s148 = sphi 0, %s134
      %s152 = sphi 0, %s152
      %s154 = sphi 0, %s152
      %s155 = sphi 0, %s154
      %s169 = sphi 0, %s155
      %s173 = sphi 0, %s173
      %s175 = sphi 0, %s173
      %s176 = sphi 0, %s175
      %s190 = sphi 0, %s176
      %s194 = sphi 0, %s194
      %s196 = sphi 0, %s194
      %s197 = sphi 0, %s196
      %s211 = sphi 0, %s197
      %s215 = sphi 0, %s215
      %s217 = sphi 0, %s215
      %s218 = sphi 0, %s217
      %s232 = sphi 0, %s218
      %s236 = sphi 0, %s236
      %s238 = sphi 0, %s236
      %s239 = sphi 0, %s238
      %s253 = sphi 0, %s239
      %s257 = sphi 0, %s257
      %s259 = sphi 0, %s257
      %s260 = sphi 0, %s259
      %s274 = sphi 0, %s260
      %s278 = sphi 0, %s278
      %s280 = sphi 0, %s278
      %s281 = sphi 0, %s280
      %s295 = sphi 0, %s281
      %s299 = sphi 0, %s299
      %s301 = sphi 0, %s299
      %s302 = sphi 0, %s301
      %s316 = sphi 0, %s302
      %s320 = sphi 0, %s320
      %s322 = sphi 0, %s320
      %s323 = sphi 0, %s322
      %s337 = sphi 0, %s323
      %s343 = sphi 0, %s345
      %s346 = sphi 0, %s343
      %s347 = sphi 0, %s346
      %s363 = sphi 0, %s347
    $region4: #{tpu_custom_call.1} parent=1 // loop_header_branch
      %32 = sbr.rel (%p30) target = $region8
    $region5: #{tpu_custom_call.1} parent=1 // loop_body
      %s34 = ssub.s32 %s29, 1
      %s35 = ssub.s32 %s29, 2
      %s36 = sadd.s32 %s29, 1
      %s37 = ssub.s32 %s29, %s36
      %p38 = scmp.eq.s32.totalorder %s37, 0
      %s40 = sadd.s32 %s39, 1
      %s41 = scalar_select %p38, %s39, %s40
      %p44 = pneg %p38
      %p45 = scmp.eq.s32.totalorder %s29, 1
      %p46 = por %p44, %p45
      %p47 = scmp.ne.s32.totalorder %s39, %s42
      %p48 = scmp.eq.s32.totalorder %s29, 0
      %p49 = por %p47, %p48
      %p50 = scmp.ne.s32.totalorder %s39, %s42
      %p51 = scmp.eq.s32.totalorder %s34, 1
      %p52 = por %p50, %p51
      %p53 = scmp.ne.s32.totalorder %s42, %s43
      %p54 = scmp.eq.s32.totalorder %s34, 0
      %p55 = por %p53, %p54
      %p56 = scmp.ne.s32.totalorder %s42, %s43
      %p57 = scmp.eq.s32.totalorder %s35, 1
      %p58 = por %p56, %p57
      %p60 = scmp.ne.s32.totalorder %s43, %s59
      %p61 = scmp.eq.s32.totalorder %s35, 0
      %p62 = por %p60, %p61
      %s63 = ssub.s32 %s29, %s36
      %p64 = scmp.eq.s32.totalorder %s63, 0
      %s66 = sadd.s32 %s65, 1
      %s67 = scalar_select %p64, %s65, %s66
      %p70 = pneg %p64
      %p71 = scmp.eq.s32.totalorder %s29, 1
      %p72 = por %p70, %p71
      %p73 = scmp.ne.s32.totalorder %s65, %s68
      %p74 = scmp.eq.s32.totalorder %s29, 0
      %p75 = por %p73, %p74
      %p76 = scmp.ne.s32.totalorder %s65, %s68
      %p77 = scmp.eq.s32.totalorder %s34, 1
      %p78 = por %p76, %p77
      %p79 = scmp.ne.s32.totalorder %s68, %s69
      %p80 = scmp.eq.s32.totalorder %s34, 0
      %p81 = por %p79, %p80
      %p82 = scmp.ne.s32.totalorder %s68, %s69
      %p83 = scmp.eq.s32.totalorder %s35, 1
      %p84 = por %p82, %p83
      %p86 = scmp.ne.s32.totalorder %s69, %s85
      %p87 = scmp.eq.s32.totalorder %s35, 0
      %p88 = por %p86, %p87
      %s90 = sadd.s32 %s89, 1
      %p93 = scmp.eq.s32.totalorder %s29, 1
      %p94 = scmp.ne.s32.totalorder %s89, %s91
      %p95 = scmp.eq.s32.totalorder %s29, 0
      %p96 = por %p94, %p95
      %p97 = scmp.ne.s32.totalorder %s89, %s91
      %p98 = scmp.eq.s32.totalorder %s34, 1
      %p99 = por %p97, %p98
      %p100 = scmp.ne.s32.totalorder %s91, %s92
      %p101 = scmp.eq.s32.totalorder %s34, 0
      %p102 = por %p100, %p101
      %p103 = scmp.ne.s32.totalorder %s91, %s92
      %p104 = scmp.eq.s32.totalorder %s35, 1
      %p105 = por %p103, %p104
      %p107 = scmp.ne.s32.totalorder %s92, %s106
      %p108 = scmp.eq.s32.totalorder %s35, 0
      %p109 = por %p107, %p108
      %s111 = sadd.s32 %s110, 1
      %p114 = scmp.eq.s32.totalorder %s29, 1
      %p115 = scmp.ne.s32.totalorder %s110, %s112
      %p116 = scmp.eq.s32.totalorder %s29, 0
      %p117 = por %p115, %p116
      %p118 = scmp.ne.s32.totalorder %s110, %s112
      %p119 = scmp.eq.s32.totalorder %s34, 1
      %p120 = por %p118, %p119
      %p121 = scmp.ne.s32.totalorder %s112, %s113
      %p122 = scmp.eq.s32.totalorder %s34, 0
      %p123 = por %p121, %p122
      %p124 = scmp.ne.s32.totalorder %s112, %s113
      %p125 = scmp.eq.s32.totalorder %s35, 1
      %p126 = por %p124, %p125
      %p128 = scmp.ne.s32.totalorder %s113, %s127
      %p129 = scmp.eq.s32.totalorder %s35, 0
      %p130 = por %p128, %p129
      %s132 = sadd.s32 %s131, 1
      %p135 = scmp.eq.s32.totalorder %s29, 1
      %p136 = scmp.ne.s32.totalorder %s131, %s133
      %p137 = scmp.eq.s32.totalorder %s29, 0
      %p138 = por %p136, %p137
      %p139 = scmp.ne.s32.totalorder %s131, %s133
      %p140 = scmp.eq.s32.totalorder %s34, 1
      %p141 = por %p139, %p140
      %p142 = scmp.ne.s32.totalorder %s133, %s134
      %p143 = scmp.eq.s32.totalorder %s34, 0
      %p144 = por %p142, %p143
      %p145 = scmp.ne.s32.totalorder %s133, %s134
      %p146 = scmp.eq.s32.totalorder %s35, 1
      %p147 = por %p145, %p146
      %p149 = scmp.ne.s32.totalorder %s134, %s148
      %p150 = scmp.eq.s32.totalorder %s35, 0
      %p151 = por %p149, %p150
      %s153 = sadd.s32 %s152, 1
      %p156 = scmp.eq.s32.totalorder %s29, 1
      %p157 = scmp.ne.s32.totalorder %s152, %s154
      %p158 = scmp.eq.s32.totalorder %s29, 0
      %p159 = por %p157, %p158
      %p160 = scmp.ne.s32.totalorder %s152, %s154
      %p161 = scmp.eq.s32.totalorder %s34, 1
      %p162 = por %p160, %p161
      %p163 = scmp.ne.s32.totalorder %s154, %s155
      %p164 = scmp.eq.s32.totalorder %s34, 0
      %p165 = por %p163, %p164
      %p166 = scmp.ne.s32.totalorder %s154, %s155
      %p167 = scmp.eq.s32.totalorder %s35, 1
      %p168 = por %p166, %p167
      %p170 = scmp.ne.s32.totalorder %s155, %s169
      %p171 = scmp.eq.s32.totalorder %s35, 0
      %p172 = por %p170, %p171
      %s174 = sadd.s32 %s173, 1
      %p177 = scmp.eq.s32.totalorder %s29, 1
      %p178 = scmp.ne.s32.totalorder %s173, %s175
      %p179 = scmp.eq.s32.totalorder %s29, 0
      %p180 = por %p178, %p179
      %p181 = scmp.ne.s32.totalorder %s173, %s175
      %p182 = scmp.eq.s32.totalorder %s34, 1
      %p183 = por %p181, %p182
      %p184 = scmp.ne.s32.totalorder %s175, %s176
      %p185 = scmp.eq.s32.totalorder %s34, 0
      %p186 = por %p184, %p185
      %p187 = scmp.ne.s32.totalorder %s175, %s176
      %p188 = scmp.eq.s32.totalorder %s35, 1
      %p189 = por %p187, %p188
      %p191 = scmp.ne.s32.totalorder %s176, %s190
      %p192 = scmp.eq.s32.totalorder %s35, 0
      %p193 = por %p191, %p192
      %s195 = sadd.s32 %s194, 1
      %p198 = scmp.eq.s32.totalorder %s29, 1
      %p199 = scmp.ne.s32.totalorder %s194, %s196
      %p200 = scmp.eq.s32.totalorder %s29, 0
      %p201 = por %p199, %p200
      %p202 = scmp.ne.s32.totalorder %s194, %s196
      %p203 = scmp.eq.s32.totalorder %s34, 1
      %p204 = por %p202, %p203
      %p205 = scmp.ne.s32.totalorder %s196, %s197
      %p206 = scmp.eq.s32.totalorder %s34, 0
      %p207 = por %p205, %p206
      %p208 = scmp.ne.s32.totalorder %s196, %s197
      %p209 = scmp.eq.s32.totalorder %s35, 1
      %p210 = por %p208, %p209
      %p212 = scmp.ne.s32.totalorder %s197, %s211
      %p213 = scmp.eq.s32.totalorder %s35, 0
      %p214 = por %p212, %p213
      %s216 = sadd.s32 %s215, 1
      %p219 = scmp.eq.s32.totalorder %s29, 1
      %p220 = scmp.ne.s32.totalorder %s215, %s217
      %p221 = scmp.eq.s32.totalorder %s29, 0
      %p222 = por %p220, %p221
      %p223 = scmp.ne.s32.totalorder %s215, %s217
      %p224 = scmp.eq.s32.totalorder %s34, 1
      %p225 = por %p223, %p224
      %p226 = scmp.ne.s32.totalorder %s217, %s218
      %p227 = scmp.eq.s32.totalorder %s34, 0
      %p228 = por %p226, %p227
      %p229 = scmp.ne.s32.totalorder %s217, %s218
      %p230 = scmp.eq.s32.totalorder %s35, 1
      %p231 = por %p229, %p230
      %p233 = scmp.ne.s32.totalorder %s218, %s232
      %p234 = scmp.eq.s32.totalorder %s35, 0
      %p235 = por %p233, %p234
      %s237 = sadd.s32 %s236, 1
      %p240 = scmp.eq.s32.totalorder %s29, 1
      %p241 = scmp.ne.s32.totalorder %s236, %s238
      %p242 = scmp.eq.s32.totalorder %s29, 0
      %p243 = por %p241, %p242
      %p244 = scmp.ne.s32.totalorder %s236, %s238
      %p245 = scmp.eq.s32.totalorder %s34, 1
      %p246 = por %p244, %p245
      %p247 = scmp.ne.s32.totalorder %s238, %s239
      %p248 = scmp.eq.s32.totalorder %s34, 0
      %p249 = por %p247, %p248
      %p250 = scmp.ne.s32.totalorder %s238, %s239
      %p251 = scmp.eq.s32.totalorder %s35, 1
      %p252 = por %p250, %p251
      %p254 = scmp.ne.s32.totalorder %s239, %s253
      %p255 = scmp.eq.s32.totalorder %s35, 0
      %p256 = por %p254, %p255
      %s258 = sadd.s32 %s257, 1
      %p261 = scmp.eq.s32.totalorder %s29, 1
      %p262 = scmp.ne.s32.totalorder %s257, %s259
      %p263 = scmp.eq.s32.totalorder %s29, 0
      %p264 = por %p262, %p263
      %p265 = scmp.ne.s32.totalorder %s257, %s259
      %p266 = scmp.eq.s32.totalorder %s34, 1
      %p267 = por %p265, %p266
      %p268 = scmp.ne.s32.totalorder %s259, %s260
      %p269 = scmp.eq.s32.totalorder %s34, 0
      %p270 = por %p268, %p269
      %p271 = scmp.ne.s32.totalorder %s259, %s260
      %p272 = scmp.eq.s32.totalorder %s35, 1
      %p273 = por %p271, %p272
      %p275 = scmp.ne.s32.totalorder %s260, %s274
      %p276 = scmp.eq.s32.totalorder %s35, 0
      %p277 = por %p275, %p276
      %s279 = sadd.s32 %s278, 1
      %p282 = scmp.eq.s32.totalorder %s29, 1
      %p283 = scmp.ne.s32.totalorder %s278, %s280
      %p284 = scmp.eq.s32.totalorder %s29, 0
      %p285 = por %p283, %p284
      %p286 = scmp.ne.s32.totalorder %s278, %s280
      %p287 = scmp.eq.s32.totalorder %s34, 1
      %p288 = por %p286, %p287
      %p289 = scmp.ne.s32.totalorder %s280, %s281
      %p290 = scmp.eq.s32.totalorder %s34, 0
      %p291 = por %p289, %p290
      %p292 = scmp.ne.s32.totalorder %s280, %s281
      %p293 = scmp.eq.s32.totalorder %s35, 1
      %p294 = por %p292, %p293
      %p296 = scmp.ne.s32.totalorder %s281, %s295
      %p297 = scmp.eq.s32.totalorder %s35, 0
      %p298 = por %p296, %p297
      %s300 = sadd.s32 %s299, 1
      %p303 = scmp.eq.s32.totalorder %s29, 1
      %p304 = scmp.ne.s32.totalorder %s299, %s301
      %p305 = scmp.eq.s32.totalorder %s29, 0
      %p306 = por %p304, %p305
      %p307 = scmp.ne.s32.totalorder %s299, %s301
      %p308 = scmp.eq.s32.totalorder %s34, 1
      %p309 = por %p307, %p308
      %p310 = scmp.ne.s32.totalorder %s301, %s302
      %p311 = scmp.eq.s32.totalorder %s34, 0
      %p312 = por %p310, %p311
      %p313 = scmp.ne.s32.totalorder %s301, %s302
      %p314 = scmp.eq.s32.totalorder %s35, 1
      %p315 = por %p313, %p314
      %p317 = scmp.ne.s32.totalorder %s302, %s316
      %p318 = scmp.eq.s32.totalorder %s35, 0
      %p319 = por %p317, %p318
      %s321 = sadd.s32 %s320, 1
      %p324 = scmp.eq.s32.totalorder %s29, 1
      %p325 = scmp.ne.s32.totalorder %s320, %s322
      %p326 = scmp.eq.s32.totalorder %s29, 0
      %p327 = por %p325, %p326
      %p328 = scmp.ne.s32.totalorder %s320, %s322
      %p329 = scmp.eq.s32.totalorder %s34, 1
      %p330 = por %p328, %p329
      %p331 = scmp.ne.s32.totalorder %s322, %s323
      %p332 = scmp.eq.s32.totalorder %s34, 0
      %p333 = por %p331, %p332
      %p334 = scmp.ne.s32.totalorder %s322, %s323
      %p335 = scmp.eq.s32.totalorder %s35, 1
      %p336 = por %p334, %p335
      %p338 = scmp.ne.s32.totalorder %s323, %s337
      %p339 = scmp.eq.s32.totalorder %s35, 0
      %p340 = por %p338, %p339
      %s341 = ssub.s32 %s29, %s36
      %p342 = scmp.eq.s32.totalorder %s341, 0
      %s344 = sadd.s32 %s343, 1
      %s345 = scalar_select %p342, %s343, %s344
      %p348 = pneg %p342
      %p349 = scmp.eq.s32.totalorder %s29, 1
      %p350 = por %p348, %p349
      %p351 = scmp.ne.s32.totalorder %s343, %s346
      %p352 = scmp.eq.s32.totalorder %s29, 0
      %p353 = por %p351, %p352
      %p354 = scmp.ne.s32.totalorder %s343, %s346
      %p355 = scmp.eq.s32.totalorder %s34, 1
      %p356 = por %p354, %p355
      %p357 = scmp.ne.s32.totalorder %s346, %s347
      %p358 = scmp.eq.s32.totalorder %s34, 0
      %p359 = por %p357, %p358
      %p360 = scmp.ne.s32.totalorder %s346, %s347
      %p361 = scmp.eq.s32.totalorder %s35, 1
      %p362 = por %p360, %p361
      %p364 = scmp.ne.s32.totalorder %s347, %s363
      %p365 = scmp.eq.s32.totalorder %s35, 0
      %p366 = por %p364, %p365
      %p367 = scmp.le.s32.totalorder 1, %s29
      %p368 = scmp.lt.s32.totalorder %s29, 3
      %p369 = pnand %p367, %p368
      %p370 = pneg %p369
      // Predicated region
      $region9: #{tpu_custom_call.1} parent=5 // pred_check
        _
      $region10: #{tpu_custom_call.1} parent=5 // pred_check_branch
        %372 = sbr.rel (%p369) target = $region12
      $region11: #{tpu_custom_call.1} parent=5 // pred_region
        %s373 = ssub.s32 %s29, 1
        // Predicated region
        $region13: #{tpu_custom_call.1} parent=11 // pred_check
          %p374 = pneg %p102
        $region14: #{tpu_custom_call.1} parent=11 // pred_check_branch
          %376 = sbr.rel (%p374) target = $region16
        $region15: #{tpu_custom_call.1} parent=11 // pred_region
          _
        $region16: #{tpu_custom_call.1} parent=11 // pred_fallthru
          _
        // Predicated region
        $region17: #{tpu_custom_call.1} parent=11 // pred_check
          %p377 = pneg %p123
        $region18: #{tpu_custom_call.1} parent=11 // pred_check_branch
          %379 = sbr.rel (%p377) target = $region20
        $region19: #{tpu_custom_call.1} parent=11 // pred_region
          _
        $region20: #{tpu_custom_call.1} parent=11 // pred_fallthru
          _
        // Predicated region
        $region21: #{tpu_custom_call.1} parent=11 // pred_check
          %p380 = pneg %p144
        $region22: #{tpu_custom_call.1} parent=11 // pred_check_branch
          %382 = sbr.rel (%p380) target = $region24
        $region23: #{tpu_custom_call.1} parent=11 // pred_region
          _
        $region24: #{tpu_custom_call.1} parent=11 // pred_fallthru
          _
        // Predicated region
        $region25: #{tpu_custom_call.1} parent=11 // pred_check
          %p383 = pneg %p165
        $region26: #{tpu_custom_call.1} parent=11 // pred_check_branch
          %385 = sbr.rel (%p383) target = $region28
        $region27: #{tpu_custom_call.1} parent=11 // pred_region
          _
        $region28: #{tpu_custom_call.1} parent=11 // pred_fallthru
          _
        // Predicated region
        $region29: #{tpu_custom_call.1} parent=11 // pred_check
          %p386 = pneg %p186
        $region30: #{tpu_custom_call.1} parent=11 // pred_check_branch
          %388 = sbr.rel (%p386) target = $region32
        $region31: #{tpu_custom_call.1} parent=11 // pred_region
          _
        $region32: #{tpu_custom_call.1} parent=11 // pred_fallthru
          _
        // Predicated region
        $region33: #{tpu_custom_call.1} parent=11 // pred_check
          %p389 = pneg %p207
        $region34: #{tpu_custom_call.1} parent=11 // pred_check_branch
          %391 = sbr.rel (%p389) target = $region36
        $region35: #{tpu_custom_call.1} parent=11 // pred_region
          _
        $region36: #{tpu_custom_call.1} parent=11 // pred_fallthru
          _
        // Predicated region
        $region37: #{tpu_custom_call.1} parent=11 // pred_check
          %p392 = pneg %p228
        $region38: #{tpu_custom_call.1} parent=11 // pred_check_branch
          %394 = sbr.rel (%p392) target = $region40
        $region39: #{tpu_custom_call.1} parent=11 // pred_region
          _
        $region40: #{tpu_custom_call.1} parent=11 // pred_fallthru
          _
        // Predicated region
        $region41: #{tpu_custom_call.1} parent=11 // pred_check
          %p395 = pneg %p249
        $region42: #{tpu_custom_call.1} parent=11 // pred_check_branch
          %397 = sbr.rel (%p395) target = $region44
        $region43: #{tpu_custom_call.1} parent=11 // pred_region
          _
        $region44: #{tpu_custom_call.1} parent=11 // pred_fallthru
          _
        // Predicated region
        $region45: #{tpu_custom_call.1} parent=11 // pred_check
          %p398 = pneg %p270
        $region46: #{tpu_custom_call.1} parent=11 // pred_check_branch
          %400 = sbr.rel (%p398) target = $region48
        $region47: #{tpu_custom_call.1} parent=11 // pred_region
          _
        $region48: #{tpu_custom_call.1} parent=11 // pred_fallthru
          _
        // Predicated region
        $region49: #{tpu_custom_call.1} parent=11 // pred_check
          %p401 = pneg %p291
        $region50: #{tpu_custom_call.1} parent=11 // pred_check_branch
          %403 = sbr.rel (%p401) target = $region52
        $region51: #{tpu_custom_call.1} parent=11 // pred_region
          _
        $region52: #{tpu_custom_call.1} parent=11 // pred_fallthru
          _
        // Predicated region
        $region53: #{tpu_custom_call.1} parent=11 // pred_check
          %p404 = pneg %p312
        $region54: #{tpu_custom_call.1} parent=11 // pred_check_branch
          %406 = sbr.rel (%p404) target = $region56
        $region55: #{tpu_custom_call.1} parent=11 // pred_region
          _
        $region56: #{tpu_custom_call.1} parent=11 // pred_fallthru
          _
        // Predicated region
        $region57: #{tpu_custom_call.1} parent=11 // pred_check
          %p407 = pneg %p333
        $region58: #{tpu_custom_call.1} parent=11 // pred_check_branch
          %409 = sbr.rel (%p407) target = $region60
        $region59: #{tpu_custom_call.1} parent=11 // pred_region
          _
        $region60: #{tpu_custom_call.1} parent=11 // pred_fallthru
          _
      $region12: #{tpu_custom_call.1} parent=5 // pred_fallthru
        _
      %p410 = scmp.lt.s32.totalorder %s29, 2
      // Predicated region
      $region61: #{tpu_custom_call.1} parent=5 // pred_check
        %p411 = pneg %p410
      $region62: #{tpu_custom_call.1} parent=5 // pred_check_branch
        %413 = sbr.rel (%p411) target = $region64
      $region63: #{tpu_custom_call.1} parent=5 // pred_region
        // Predicated region
        $region65: #{tpu_custom_call.1} parent=63 // pred_check
          %p414 = pneg %p49
        $region66: #{tpu_custom_call.1} parent=63 // pred_check_branch
          %416 = sbr.rel (%p414) target = $region68
        $region67: #{tpu_custom_call.1} parent=63 // pred_region
          %s417 = sand.u32 %s39, 1
          %s418 = scalar_lea.sflag [#allocation3], %s417
          %s419 = sand.u32 %s39, 1
          %s420 = smul.addr %s419, 8
          %s421 = scalar_lea.vmem [#allocation2], %s420
          %423 = vsyncadd %s418, 0
          %s424 = smul.addr %s29, 8
          %s425 = scalar_lea.hbm %s0, %s424
          %s427 = sshll.u32 %s425, 4
          %s428 = int_to_ptr.hbm [resolvable:$true] %s427
          %s429 = sshll.u32 %s421, 4
          %s430 = int_to_ptr.vmem [resolvable:$true] %s429
          %432 = dma.hbm_to_vmem [thread:$0]  %s428, 128, %s430, %s418
        $region68: #{tpu_custom_call.1} parent=63 // pred_fallthru
          _
        // Predicated region
        $region69: #{tpu_custom_call.1} parent=63 // pred_check
          %p433 = pneg %p75
        $region70: #{tpu_custom_call.1} parent=63 // pred_check_branch
          %435 = sbr.rel (%p433) target = $region72
        $region71: #{tpu_custom_call.1} parent=63 // pred_region
          %s436 = sand.u32 %s65, 1
          %s437 = scalar_lea.sflag [#allocation6], %s436
          %s438 = sand.u32 %s65, 1
          %s439 = scalar_lea.vmem [#allocation5], %s438
          %441 = vsyncadd %s437, 0
          %s442 = scalar_lea.hbm %s1, %s29
          %s444 = sshll.u32 %s442, 4
          %s445 = int_to_ptr.hbm [resolvable:$true] %s444
          %s446 = sshll.u32 %s439, 4
          %s447 = int_to_ptr.vmem [resolvable:$true] %s446
          %449 = dma.hbm_to_vmem [thread:$0]  %s445, 16, %s447, %s437
        $region72: #{tpu_custom_call.1} parent=63 // pred_fallthru
          _
      $region64: #{tpu_custom_call.1} parent=5 // pred_fallthru
        _
      %p450 = scmp.le.s32.totalorder 1, %s29
      %p451 = scmp.lt.s32.totalorder %s29, 3
      %p452 = pnand %p450, %p451
      %p453 = pneg %p452
      // Predicated region
      $region73: #{tpu_custom_call.1} parent=5 // pred_check
        _
      $region74: #{tpu_custom_call.1} parent=5 // pred_check_branch
        %455 = sbr.rel (%p452) target = $region76
      $region75: #{tpu_custom_call.1} parent=5 // pred_region
        %s456 = ssub.s32 %s29, 1
        %s457 = sand.u32 %s42, 1
        %s458 = scalar_lea.sflag [#allocation3], %s457
        %s459 = sand.u32 %s42, 1
        %s460 = smul.addr %s459, 8
        %s461 = scalar_lea.vmem [#allocation2], %s460
        // Predicated region
        $region77: #{tpu_custom_call.1} parent=75 // pred_check
          %p462 = pneg %p55
        $region78: #{tpu_custom_call.1} parent=75 // pred_check_branch
          %464 = sbr.rel (%p462) target = $region80
        $region79: #{tpu_custom_call.1} parent=75 // pred_region
          %466 = dma.done %s458, 128
        $region80: #{tpu_custom_call.1} parent=75 // pred_fallthru
          _
        %s467 = sand.u32 %s68, 1
        %s468 = scalar_lea.sflag [#allocation6], %s467
        %s469 = sand.u32 %s68, 1
        %s470 = scalar_lea.vmem [#allocation5], %s469
        // Predicated region
        $region81: #{tpu_custom_call.1} parent=75 // pred_check
          %p471 = pneg %p81
        $region82: #{tpu_custom_call.1} parent=75 // pred_check_branch
          %473 = sbr.rel (%p471) target = $region84
        $region83: #{tpu_custom_call.1} parent=75 // pred_region
          %475 = dma.done %s468, 16
        $region84: #{tpu_custom_call.1} parent=75 // pred_fallthru
          _
        %s476 = sand.u32 %s42, 1
        %s477 = scalar_lea.sflag [#allocation3], %s476
        %s478 = sand.u32 %s42, 1
        %s479 = smul.addr %s478, 8
        %s480 = scalar_lea.vmem [#allocation2], %s479
        %p481 = pneg %p55
        %p482 = pneg %p52
        %s483 = sand.u32 %s68, 1
        %s484 = scalar_lea.sflag [#allocation6], %s483
        %s485 = sand.u32 %s68, 1
        %s486 = scalar_lea.vmem [#allocation5], %s485
        %p487 = pneg %p81
        %p488 = pneg %p78
        %p489 = pneg %p102
        %p490 = pneg %p99
        %p491 = pneg %p123
        %p492 = pneg %p120
        %p493 = pneg %p144
        %p494 = pneg %p141
        %p495 = pneg %p165
        %p496 = pneg %p162
        %p497 = pneg %p186
        %p498 = pneg %p183
        %p499 = pneg %p207
        %p500 = pneg %p204
        %p501 = pneg %p228
        %p502 = pneg %p225
        %p503 = pneg %p249
        %p504 = pneg %p246
        %p505 = pneg %p270
        %p506 = pneg %p267
        %p507 = pneg %p291
        %p508 = pneg %p288
        %p509 = pneg %p312
        %p510 = pneg %p309
        %p511 = pneg %p333
        %p512 = pneg %p330
        %p513 = pneg %p359
        %p514 = pneg %p356
        %s515 = sand.u32 %s346, 1
        %s516 = scalar_lea.sflag [#allocation4], %s515
        %s517 = sand.u32 %s346, 1
        %s518 = smul.addr %s517, 8
        %s519 = scalar_lea.vmem [#allocation7], %s518
        %v520 = vld [vmem:[%s461] sm:$0xff]
        %v521 = vld [vmem:[%s2] sm:$0xff]
        %v522 = vld [vmem:[%s2 + $0x8] sm:$0xff]
        %v523 = vld [vmem:[%s2 + $0x10] sm:$0xff]
        %v524 = vld [vmem:[%s2 + $0x18] sm:$0xff]
        %v525 = vld [vmem:[%s3] sm:$0x1]
        %v527 = vperm.slane %v525, 0
        %vm529 = vcmask 261120
        %v531 = vsel %vm529, %v520, 0
        %533 = vmatpush.msra.mxu0 0.0
        %534 = vmatpush.msra.mxu0 0.0
        %535 = vmatpush.msra.mxu0 0.0
        %536 = vmatpush.msra.mxu0 0.0
        %537 = vmatpush.msra.mxu0 0.0
        %538 = vmatpush.msra.mxu0 0.0
        %539 = vmatpush.msra.mxu0 0.0
        %540 = vmatpush.msra.mxu0 0.0
        %541 = vmatpush.msra.mxu0 0.0
        %542 = vmatpush.msra.mxu0 0.0
        %543 = vmatpush.msra.mxu0 0.0
        %544 = vmatpush.msra.mxu0 0.0
        %545 = vmatpush.msra.mxu0 %v524
        %546 = vmatpush.msra.mxu0 %v523
        %547 = vmatpush.msra.mxu0 %v522
        %548 = vmatpush.msra.mxu0 %v521
        %549 = vmatmul.f32.gmra.mxu0 %v531
        %v550 = vpop.f32.mrf.mxu0
        %v551 = vadd.f32 %v527, %v550
        %552 = vdwg.mxu0
        %554 = vrot.lane.b32.xlu0 %v551, 120
        %v555 = vpop.permute.xlu0 %554
        %556 = vrot.lane.b32.xlu0 %v551, 112
        %v557 = vpop.permute.xlu0 %556
        %558 = vrot.lane.b32.xlu0 %v551, 104
        %v559 = vpop.permute.xlu0 %558
        %560 = vrot.lane.b32.xlu0 %v551, 96
        %v561 = vpop.permute.xlu0 %560
        %vm562 = vcmask 64512
        %v563 = vsel %vm562, %v551, 0
        %v565 = vsel %vm562, %v561, 0
        %567 = vmatpush.xpose.msra.mxu0 0.0
        %568 = vmatpush.xpose.msra.mxu0 0.0
        %569 = vmatpush.xpose.msra.mxu0 0.0
        %570 = vmatpush.xpose.msra.mxu0 0.0
        %571 = vmatpush.xpose.msra.mxu0 0.0
        %572 = vmatpush.xpose.msra.mxu0 0.0
        %573 = vmatpush.xpose.msra.mxu0 0.0
        %574 = vmatpush.xpose.msra.mxu0 0.0
        %575 = vmatpush.xpose.msra.mxu0 0.0
        %576 = vmatpush.xpose.msra.mxu0 0.0
        %577 = vmatpush.xpose.msra.mxu0 0.0
        %578 = vmatpush.xpose.msra.mxu0 0.0
        %579 = vmatpush.xpose.msra.mxu0 0.0
        %580 = vmatpush.xpose.msra.mxu0 0.0
        %581 = vmatpush.xpose.msra.mxu0 0.0
        %582 = vmatpush.xpose.msra.mxu0 %v565
        %583 = vmatmul.f32.gmra.mxu0 %v563
        %v584 = vpop.f32.mrf.mxu0
        %v585 = vadd.f32 0.0, %v584
        %586 = vdwg.mxu0
        %587 = vrot.lane.b32.xlu0 %v555, 96
        %v588 = vpop.permute.xlu0 %587
        %v589 = vsel %vm562, %v555, 0
        %v591 = vsel %vm562, %v588, 0
        %593 = vmatpush.xpose.msra.mxu0 0.0
        %594 = vmatpush.xpose.msra.mxu0 0.0
        %595 = vmatpush.xpose.msra.mxu0 0.0
        %596 = vmatpush.xpose.msra.mxu0 0.0
        %597 = vmatpush.xpose.msra.mxu0 0.0
        %598 = vmatpush.xpose.msra.mxu0 0.0
        %599 = vmatpush.xpose.msra.mxu0 0.0
        %600 = vmatpush.xpose.msra.mxu0 0.0
        %601 = vmatpush.xpose.msra.mxu0 0.0
        %602 = vmatpush.xpose.msra.mxu0 0.0
        %603 = vmatpush.xpose.msra.mxu0 0.0
        %604 = vmatpush.xpose.msra.mxu0 0.0
        %605 = vmatpush.xpose.msra.mxu0 0.0
        %606 = vmatpush.xpose.msra.mxu0 0.0
        %607 = vmatpush.xpose.msra.mxu0 0.0
        %608 = vmatpush.xpose.msra.mxu0 %v591
        %609 = vmatmul.f32.gmra.mxu0 %v589
        %v610 = vpop.f32.mrf.mxu0
        %v611 = vadd.f32 0.0, %v610
        %612 = vdwg.mxu0
        %613 = vrot.lane.b32.xlu0 %v557, 96
        %v614 = vpop.permute.xlu0 %613
        %v615 = vsel %vm562, %v557, 0
        %v617 = vsel %vm562, %v614, 0
        %619 = vmatpush.xpose.msra.mxu0 0.0
        %620 = vmatpush.xpose.msra.mxu0 0.0
        %621 = vmatpush.xpose.msra.mxu0 0.0
        %622 = vmatpush.xpose.msra.mxu0 0.0
        %623 = vmatpush.xpose.msra.mxu0 0.0
        %624 = vmatpush.xpose.msra.mxu0 0.0
        %625 = vmatpush.xpose.msra.mxu0 0.0
        %626 = vmatpush.xpose.msra.mxu0 0.0
        %627 = vmatpush.xpose.msra.mxu0 0.0
        %628 = vmatpush.xpose.msra.mxu0 0.0
        %629 = vmatpush.xpose.msra.mxu0 0.0
        %630 = vmatpush.xpose.msra.mxu0 0.0
        %631 = vmatpush.xpose.msra.mxu0 0.0
        %632 = vmatpush.xpose.msra.mxu0 0.0
        %633 = vmatpush.xpose.msra.mxu0 0.0
        %634 = vmatpush.xpose.msra.mxu0 %v617
        %635 = vmatmul.f32.gmra.mxu0 %v615
        %v636 = vpop.f32.mrf.mxu0
        %v637 = vadd.f32 0.0, %v636
        %638 = vdwg.mxu0
        %639 = vrot.lane.b32.xlu0 %v559, 96
        %v640 = vpop.permute.xlu0 %639
        %v641 = vsel %vm562, %v559, 0
        %v643 = vsel %vm562, %v640, 0
        %645 = vmatpush.xpose.msra.mxu0 0.0
        %646 = vmatpush.xpose.msra.mxu0 0.0
        %647 = vmatpush.xpose.msra.mxu0 0.0
        %648 = vmatpush.xpose.msra.mxu0 0.0
        %649 = vmatpush.xpose.msra.mxu0 0.0
        %650 = vmatpush.xpose.msra.mxu0 0.0
        %651 = vmatpush.xpose.msra.mxu0 0.0
        %652 = vmatpush.xpose.msra.mxu0 0.0
        %653 = vmatpush.xpose.msra.mxu0 0.0
        %654 = vmatpush.xpose.msra.mxu0 0.0
        %655 = vmatpush.xpose.msra.mxu0 0.0
        %656 = vmatpush.xpose.msra.mxu0 0.0
        %657 = vmatpush.xpose.msra.mxu0 0.0
        %658 = vmatpush.xpose.msra.mxu0 0.0
        %659 = vmatpush.xpose.msra.mxu0 0.0
        %660 = vmatpush.xpose.msra.mxu0 %v643
        %661 = vmatmul.f32.gmra.mxu0 %v641
        %v662 = vpop.f32.mrf.mxu0
        %v663 = vadd.f32 0.0, %v662
        %664 = vdwg.mxu0
        %v665 = vmul.f32 %v585, 0.35355338
        %v666 = vmul.f32 %v611, 0.35355338
        %v667 = vmul.f32 %v637, 0.35355338
        %v668 = vmul.f32 %v663, 0.35355338
        %v669 = vld [vmem:[%s470] sm:$0x1]
        %v671 = vperm.slane %v669, 0
        %v673 = vadd.f32 %v665, %v671
        %v674 = vadd.f32 %v666, %v671
        %v675 = vadd.f32 %v667, %v671
        %v676 = vadd.f32 %v668, %v671
        %v677 = vsel %vm562, %v673, -inf
        %678 = vmax.xlane.f32.xlu0 %v677
        %v679 = vpop.xlane.xlu0 %678
        %v680 = vsel %vm562, %v674, -inf
        %681 = vmax.xlane.f32.xlu0 %v680
        %v682 = vpop.xlane.xlu0 %681
        %v683 = vsel %vm562, %v675, -inf
        %684 = vmax.xlane.f32.xlu0 %v683
        %v685 = vpop.xlane.xlu0 %684
        %v686 = vsel %vm562, %v676, -inf
        %687 = vmax.xlane.f32.xlu0 %v686
        %v688 = vpop.xlane.xlu0 %687
        %v689 = vsub.f32 %v673, %v679
        %v690 = vsub.f32 %v674, %v682
        %v691 = vsub.f32 %v675, %v685
        %v692 = vsub.f32 %v676, %v688
        %v693 = vmul.f32 %v689, 1.442695
        %v694 = vpow.pop %v693
        %v695 = vmul.f32 %v690, 1.442695
        %v696 = vpow.pop %v695
        %v697 = vmul.f32 %v691, 1.442695
        %v698 = vpow.pop %v697
        %v699 = vmul.f32 %v692, 1.442695
        %v700 = vpow.pop %v699
        %v701 = vsel %vm562, %v694, 0.0
        %702 = vadd.xlane.f32.xlu0 %v701
        %v703 = vpop.xlane.xlu0 %702
        %v704 = vsel %vm562, %v696, 0.0
        %705 = vadd.xlane.f32.xlu0 %v704
        %v706 = vpop.xlane.xlu0 %705
        %v707 = vsel %vm562, %v698, 0.0
        %708 = vadd.xlane.f32.xlu0 %v707
        %v709 = vpop.xlane.xlu0 %708
        %v710 = vsel %vm562, %v700, 0.0
        %711 = vadd.xlane.f32.xlu0 %v710
        %v712 = vpop.xlane.xlu0 %711
        %v713 = vrcp.pop %v703
        %v714 = vrcp.pop %v706
        %v715 = vrcp.pop %v709
        %v716 = vrcp.pop %v712
        %v717 = vmul.f32 %v703, %v713
        %v718 = vmul.f32 %v706, %v714
        %v719 = vmul.f32 %v709, %v715
        %v720 = vmul.f32 %v712, %v716
        %v721 = vsub.f32 2.0, %v717
        %v722 = vsub.f32 2.0, %v718
        %v723 = vsub.f32 2.0, %v719
        %v724 = vsub.f32 2.0, %v720
        %v725 = vmul.f32 %v713, %v721
        %v726 = vmul.f32 %v714, %v722
        %v727 = vmul.f32 %v715, %v723
        %v728 = vmul.f32 %v716, %v724
        %v729 = vmul.f32 %v694, %v725
        %v730 = vmul.f32 %v696, %v726
        %v731 = vmul.f32 %v698, %v727
        %v732 = vmul.f32 %v700, %v728
        %733 = vrot.lane.b32.xlu0 %v551, 64
        %v734 = vpop.permute.xlu0 %733
        %v737 = vsel %vm562, %v729, 0
        %739 = vmatpush.msra.mxu0 0.0
        %740 = vmatpush.msra.mxu0 0.0
        %741 = vmatpush.msra.mxu0 0.0
        %742 = vmatpush.msra.mxu0 0.0
        %743 = vmatpush.msra.mxu0 0.0
        %744 = vmatpush.msra.mxu0 0.0
        %745 = vmatpush.msra.mxu0 0.0
        %746 = vmatpush.msra.mxu0 0.0
        %747 = vmatpush.msra.mxu0 0.0
        %748 = vmatpush.msra.mxu0 0.0
        %749 = vmatpush.msra.mxu0 0.0
        %750 = vmatpush.msra.mxu0 0.0
        %751 = vmatpush.msra.mxu0 0.0
        %752 = vmatpush.msra.mxu0 0.0
        %753 = vmatpush.msra.mxu0 0.0
        %754 = vmatpush.msra.mxu0 %v734
        %755 = vmatmul.f32.gmra.mxu0 %v737
        %v756 = vpop.f32.mrf.mxu0
        %v757 = vadd.f32 0.0, %v756
        %758 = vdwg.mxu0
        %759 = vrot.lane.b32.xlu0 %v555, 64
        %v760 = vpop.permute.xlu0 %759
        %v763 = vsel %vm562, %v730, 0
        %765 = vmatpush.msra.mxu0 0.0
        %766 = vmatpush.msra.mxu0 0.0
        %767 = vmatpush.msra.mxu0 0.0
        %768 = vmatpush.msra.mxu0 0.0
        %769 = vmatpush.msra.mxu0 0.0
        %770 = vmatpush.msra.mxu0 0.0
        %771 = vmatpush.msra.mxu0 0.0
        %772 = vmatpush.msra.mxu0 0.0
        %773 = vmatpush.msra.mxu0 0.0
        %774 = vmatpush.msra.mxu0 0.0
        %775 = vmatpush.msra.mxu0 0.0
        %776 = vmatpush.msra.mxu0 0.0
        %777 = vmatpush.msra.mxu0 0.0
        %778 = vmatpush.msra.mxu0 0.0
        %779 = vmatpush.msra.mxu0 0.0
        %780 = vmatpush.msra.mxu0 %v760
        %781 = vmatmul.f32.gmra.mxu0 %v763
        %v782 = vpop.f32.mrf.mxu0
        %v783 = vadd.f32 0.0, %v782
        %784 = vdwg.mxu0
        %785 = vrot.lane.b32.xlu0 %v557, 64
        %v786 = vpop.permute.xlu0 %785
        %v789 = vsel %vm562, %v731, 0
        %791 = vmatpush.msra.mxu0 0.0
        %792 = vmatpush.msra.mxu0 0.0
        %793 = vmatpush.msra.mxu0 0.0
        %794 = vmatpush.msra.mxu0 0.0
        %795 = vmatpush.msra.mxu0 0.0
        %796 = vmatpush.msra.mxu0 0.0
        %797 = vmatpush.msra.mxu0 0.0
        %798 = vmatpush.msra.mxu0 0.0
        %799 = vmatpush.msra.mxu0 0.0
        %800 = vmatpush.msra.mxu0 0.0
        %801 = vmatpush.msra.mxu0 0.0
        %802 = vmatpush.msra.mxu0 0.0
        %803 = vmatpush.msra.mxu0 0.0
        %804 = vmatpush.msra.mxu0 0.0
        %805 = vmatpush.msra.mxu0 0.0
        %806 = vmatpush.msra.mxu0 %v786
        %807 = vmatmul.f32.gmra.mxu0 %v789
        %v808 = vpop.f32.mrf.mxu0
        %v809 = vadd.f32 0.0, %v808
        %810 = vdwg.mxu0
        %811 = vrot.lane.b32.xlu0 %v559, 64
        %v812 = vpop.permute.xlu0 %811
        %v815 = vsel %vm562, %v732, 0
        %817 = vmatpush.msra.mxu0 0.0
        %818 = vmatpush.msra.mxu0 0.0
        %819 = vmatpush.msra.mxu0 0.0
        %820 = vmatpush.msra.mxu0 0.0
        %821 = vmatpush.msra.mxu0 0.0
        %822 = vmatpush.msra.mxu0 0.0
        %823 = vmatpush.msra.mxu0 0.0
        %824 = vmatpush.msra.mxu0 0.0
        %825 = vmatpush.msra.mxu0 0.0
        %826 = vmatpush.msra.mxu0 0.0
        %827 = vmatpush.msra.mxu0 0.0
        %828 = vmatpush.msra.mxu0 0.0
        %829 = vmatpush.msra.mxu0 0.0
        %830 = vmatpush.msra.mxu0 0.0
        %831 = vmatpush.msra.mxu0 0.0
        %832 = vmatpush.msra.mxu0 %v812
        %833 = vmatmul.f32.gmra.mxu0 %v815
        %v834 = vpop.f32.mrf.mxu0
        %v835 = vadd.f32 0.0, %v834
        %836 = vdwg.mxu0
        %v837 = vld [vmem:[%s4] sm:$0xff]
        %v838 = vld [vmem:[%s4 + $0x8] sm:$0xff]
        %v839 = vld [vmem:[%s4 + $0x10] sm:$0xff]
        %v840 = vld [vmem:[%s4 + $0x18] sm:$0xff]
        %v842 = vsel %vm562, %v757, 0
        %844 = vmatpush.msra.mxu0 0.0
        %845 = vmatpush.msra.mxu0 0.0
        %846 = vmatpush.msra.mxu0 0.0
        %847 = vmatpush.msra.mxu0 0.0
        %848 = vmatpush.msra.mxu0 0.0
        %849 = vmatpush.msra.mxu0 0.0
        %850 = vmatpush.msra.mxu0 0.0
        %851 = vmatpush.msra.mxu0 0.0
        %852 = vmatpush.msra.mxu0 0.0
        %853 = vmatpush.msra.mxu0 0.0
        %854 = vmatpush.msra.mxu0 0.0
        %855 = vmatpush.msra.mxu0 0.0
        %856 = vmatpush.msra.mxu0 0.0
        %857 = vmatpush.msra.mxu0 0.0
        %858 = vmatpush.msra.mxu0 0.0
        %859 = vmatpush.msra.mxu0 %v837
        %860 = vmatmul.f32.gmra.mxu0 %v842
        %v861 = vpop.f32.mrf.mxu0
        %v862 = vadd.f32 0.0, %v861
        %863 = vdwg.mxu0
        %v865 = vsel %vm562, %v783, 0
        %867 = vmatpush.msra.mxu0 0.0
        %868 = vmatpush.msra.mxu0 0.0
        %869 = vmatpush.msra.mxu0 0.0
        %870 = vmatpush.msra.mxu0 0.0
        %871 = vmatpush.msra.mxu0 0.0
        %872 = vmatpush.msra.mxu0 0.0
        %873 = vmatpush.msra.mxu0 0.0
        %874 = vmatpush.msra.mxu0 0.0
        %875 = vmatpush.msra.mxu0 0.0
        %876 = vmatpush.msra.mxu0 0.0
        %877 = vmatpush.msra.mxu0 0.0
        %878 = vmatpush.msra.mxu0 0.0
        %879 = vmatpush.msra.mxu0 0.0
        %880 = vmatpush.msra.mxu0 0.0
        %881 = vmatpush.msra.mxu0 0.0
        %882 = vmatpush.msra.mxu0 %v838
        %883 = vmatmul.f32.gmra.mxu0 %v865
        %v884 = vpop.f32.mrf.mxu0
        %v885 = vadd.f32 0.0, %v884
        %886 = vdwg.mxu0
        %v888 = vsel %vm562, %v809, 0
        %890 = vmatpush.msra.mxu0 0.0
        %891 = vmatpush.msra.mxu0 0.0
        %892 = vmatpush.msra.mxu0 0.0
        %893 = vmatpush.msra.mxu0 0.0
        %894 = vmatpush.msra.mxu0 0.0
        %895 = vmatpush.msra.mxu0 0.0
        %896 = vmatpush.msra.mxu0 0.0
        %897 = vmatpush.msra.mxu0 0.0
        %898 = vmatpush.msra.mxu0 0.0
        %899 = vmatpush.msra.mxu0 0.0
        %900 = vmatpush.msra.mxu0 0.0
        %901 = vmatpush.msra.mxu0 0.0
        %902 = vmatpush.msra.mxu0 0.0
        %903 = vmatpush.msra.mxu0 0.0
        %904 = vmatpush.msra.mxu0 0.0
        %905 = vmatpush.msra.mxu0 %v839
        %906 = vmatmul.f32.gmra.mxu0 %v888
        %v907 = vpop.f32.mrf.mxu0
        %v908 = vadd.f32 0.0, %v907
        %909 = vdwg.mxu0
        %v911 = vsel %vm562, %v835, 0
        %913 = vmatpush.msra.mxu0 0.0
        %914 = vmatpush.msra.mxu0 0.0
        %915 = vmatpush.msra.mxu0 0.0
        %916 = vmatpush.msra.mxu0 0.0
        %917 = vmatpush.msra.mxu0 0.0
        %918 = vmatpush.msra.mxu0 0.0
        %919 = vmatpush.msra.mxu0 0.0
        %920 = vmatpush.msra.mxu0 0.0
        %921 = vmatpush.msra.mxu0 0.0
        %922 = vmatpush.msra.mxu0 0.0
        %923 = vmatpush.msra.mxu0 0.0
        %924 = vmatpush.msra.mxu0 0.0
        %925 = vmatpush.msra.mxu0 0.0
        %926 = vmatpush.msra.mxu0 0.0
        %927 = vmatpush.msra.mxu0 0.0
        %928 = vmatpush.msra.mxu0 %v840
        %929 = vmatmul.f32.gmra.mxu0 %v911
        %v930 = vpop.f32.mrf.mxu0
        %v931 = vadd.f32 0.0, %v930
        %932 = vdwg.mxu0
        %v933 = vsel %vm529, %v862, 0.0
        %v934 = vsel %vm529, %v885, 0.0
        %v935 = vadd.f32 %v933, %v934
        %v936 = vsel %vm529, %v908, 0.0
        %v937 = vadd.f32 %v935, %v936
        %v938 = vsel %vm529, %v931, 0.0
        %v939 = vadd.f32 %v937, %v938
        %v940 = vld [vmem:[%s5] sm:$0x1]
        %v942 = vperm.slane %v940, 0
        %v944 = vadd.f32 %v939, %v942
        %v945 = vadd.f32 %v944, %v520
        %v946 = vld [vmem:[%s6] sm:$0x1]
        %v947 = vld [vmem:[%s7] sm:$0x1]
        %v948 = vsel %vm529, %v945, 0.0
        %949 = vadd.xlane.f32.xlu0 %v948
        %v950 = vpop.xlane.xlu0 %949
        %v951 = vrcp.pop 32.0
        %v952 = vmul.f32 32.0, %v951
        %v953 = vsub.f32 1.0, %v952
        %v954 = vmul.f32 %v951, %v953
        %v955 = vadd.f32 %v951, %v954
        %vm956 = vweird.f32 %v951
        %v957 = vsel %vm956, %v951, %v955
        %v958 = vmul.f32 %v950, %v957
        %v959 = vsub.f32 %v945, %v958
        %v960 = vmul.f32 %v959, %v959
        %v961 = vsel %vm529, %v960, 0.0
        %962 = vadd.xlane.f32.xlu0 %v961
        %v963 = vpop.xlane.xlu0 %962
        %v964 = vmul.f32 %v963, %v957
        %v965 = vadd.f32 %v964, 1e-12
        %v966 = vrsqrt.pop %v965
        %v967 = vmul.f32 %v966, %v965
        %v968 = vmul.f32 %v967, %v966
        %v969 = vmul.f32 0.5, %v968
        %v970 = vsub.f32 1.5, %v969
        %v971 = vmul.f32 %v966, %v970
        %vm972 = vweird.f32 %v965
        %vm973 = vweird.f32 %v966
        %vm974 = vmor %vm972, %vm973
        %v975 = vsel %vm974, %v966, %v971
        %v976 = vmul.f32 %v959, %v975
        %v978 = vperm.slane %v946, 0
        %v980 = vmul.f32 %v976, %v978
        %v982 = vperm.slane %v947, 0
        %v984 = vadd.f32 %v980, %v982
        %v985 = vld [vmem:[%s8] sm:$0xff]
        %v986 = vld [vmem:[%s8 + $0x8] sm:$0xff]
        %v987 = vld [vmem:[%s8 + $0x10] sm:$0xff]
        %v988 = vld [vmem:[%s8 + $0x18] sm:$0xff]
        %v989 = vld [vmem:[%s9] sm:$0x1]
        %v991 = vperm.slane %v989, 0
        %v994 = vsel %vm529, %v984, 0
        %996 = vmatpush.msra.mxu0 0.0
        %997 = vmatpush.msra.mxu0 0.0
        %998 = vmatpush.msra.mxu0 0.0
        %999 = vmatpush.msra.mxu0 0.0
        %1000 = vmatpush.msra.mxu0 0.0
        %1001 = vmatpush.msra.mxu0 0.0
        %1002 = vmatpush.msra.mxu0 0.0
        %1003 = vmatpush.msra.mxu0 0.0
        %1004 = vmatpush.msra.mxu0 0.0
        %1005 = vmatpush.msra.mxu0 0.0
        %1006 = vmatpush.msra.mxu0 0.0
        %1007 = vmatpush.msra.mxu0 0.0
        %1008 = vmatpush.msra.mxu0 %v988
        %1009 = vmatpush.msra.mxu0 %v987
        %1010 = vmatpush.msra.mxu0 %v986
        %1011 = vmatpush.msra.mxu0 %v985
        %1012 = vmatmul.f32.gmra.mxu0 %v994
        %v1013 = vpop.f32.mrf.mxu0
        %v1014 = vadd.f32 %v991, %v1013
        %1015 = vdwg.mxu0
        %v1016 = vmul.f32 %v1014, 0.5
        %v1017 = vmul.f32 %v1014, 0.70710677
        %v1018 = vmul.f32 %v1017, %v1017
        %v1019 = vmin.f32 16.0, %v1018
        %v1020 = vmul.f32 %v1019, 2.1237322e-06
        %v1021 = vadd.f32 %v1020, 0.00028619796
        %v1022 = vmul.f32 %v1019, %v1021
        %v1023 = vadd.f32 %v1022, 0.0036580483
        %v1024 = vmul.f32 %v1019, %v1023
        %v1025 = vadd.f32 %v1024, 0.05243302
        %v1026 = vmul.f32 %v1019, %v1025
        %v1027 = vadd.f32 %v1026, 0.18741608
        %v1028 = vmul.f32 %v1019, %v1027
        %v1029 = vadd.f32 %v1028, 1.1283791
        %v1030 = vmul.f32 %v1017, %v1029
        %v1031 = vmul.f32 %v1019, 3.8918573e-05
        %v1032 = vadd.f32 %v1031, 0.001143296
        %v1033 = vmul.f32 %v1019, %v1032
        %v1034 = vadd.f32 %v1033, 0.014752088
        %v1035 = vmul.f32 %v1019, %v1034
        %v1036 = vadd.f32 %v1035, 0.112945676
        %v1037 = vmul.f32 %v1019, %v1036
        %v1038 = vadd.f32 %v1037, 0.4994258
        %v1039 = vmul.f32 %v1019, %v1038
        %v1040 = vadd.f32 %v1039, 1.0
        %v1041 = vrcp.pop %v1040
        %v1042 = vmul.f32 %v1040, %v1041
        %v1043 = vsub.f32 1.0, %v1042
        %v1044 = vmul.f32 %v1041, %v1043
        %v1045 = vadd.f32 %v1041, %v1044
        %vm1046 = vweird.f32 %v1040
        %vm1047 = vweird.f32 %v1041
        %vm1048 = vmor %vm1046, %vm1047
        %v1049 = vsel %vm1048, %v1041, %v1045
        %v1050 = vand.u32 2147483647, %v1040
        %vm1051 = vcmp.eq.f32.partialorder %v1050, 8.507059e+37
        %v1052 = vand.u32 %v1040, 2147483648
        %v1053 = vor.u32 1.1754944e-38, %v1052
        %v1054 = vsel %vm1051, %v1053, %v1049
        %v1055 = vmul.f32 %v1030, %v1054
        %v1056 = vmin.f32 %v1055, 1.0
        %v1057 = vmax.f32 %v1056, -1.0
        %v1058 = vadd.f32 %v1057, 1.0
        %v1059 = vmul.f32 %v1016, %v1058
        %v1060 = vld [vmem:[%s10] sm:$0xff]
        %v1061 = vld [vmem:[%s10 + $0x8] sm:$0xff]
        %v1062 = vld [vmem:[%s10 + $0x10] sm:$0xff]
        %v1063 = vld [vmem:[%s10 + $0x18] sm:$0xff]
        %v1064 = vld [vmem:[%s10 + $0x20] sm:$0xff]
        %v1065 = vld [vmem:[%s10 + $0x28] sm:$0xff]
        %v1066 = vld [vmem:[%s10 + $0x30] sm:$0xff]
        %v1067 = vld [vmem:[%s10 + $0x38] sm:$0xff]
        %v1068 = vld [vmem:[%s11] sm:$0x1]
        %v1070 = vperm.slane %v1068, 0
        %vm1072 = vcmask 523264
        %v1074 = vsel %vm1072, %v1059, 0
        %1076 = vmatpush.msra.mxu0 0.0
        %1077 = vmatpush.msra.mxu0 0.0
        %1078 = vmatpush.msra.mxu0 0.0
        %1079 = vmatpush.msra.mxu0 0.0
        %1080 = vmatpush.msra.mxu0 0.0
        %1081 = vmatpush.msra.mxu0 0.0
        %1082 = vmatpush.msra.mxu0 0.0
        %1083 = vmatpush.msra.mxu0 0.0
        %1084 = vmatpush.msra.mxu0 %v1067
        %1085 = vmatpush.msra.mxu0 %v1066
        %1086 = vmatpush.msra.mxu0 %v1065
        %1087 = vmatpush.msra.mxu0 %v1064
        %1088 = vmatpush.msra.mxu0 %v1063
        %1089 = vmatpush.msra.mxu0 %v1062
        %1090 = vmatpush.msra.mxu0 %v1061
        %1091 = vmatpush.msra.mxu0 %v1060
        %1092 = vmatmul.f32.gmra.mxu0 %v1074
        %v1093 = vpop.f32.mrf.mxu0
        %v1094 = vadd.f32 %v1070, %v1093
        %1095 = vdwg.mxu0
        %v1096 = vadd.f32 %v1094, %v984
        %v1097 = vld [vmem:[%s12] sm:$0x1]
        %v1098 = vld [vmem:[%s13] sm:$0x1]
        %v1099 = vsel %vm529, %v1096, 0.0
        %1100 = vadd.xlane.f32.xlu0 %v1099
        %v1101 = vpop.xlane.xlu0 %1100
        %v1102 = vmul.f32 %v1101, %v957
        %v1103 = vsub.f32 %v1096, %v1102
        %v1104 = vmul.f32 %v1103, %v1103
        %v1105 = vsel %vm529, %v1104, 0.0
        %1106 = vadd.xlane.f32.xlu0 %v1105
        %v1107 = vpop.xlane.xlu0 %1106
        %v1108 = vmul.f32 %v1107, %v957
        %v1109 = vadd.f32 %v1108, 1e-12
        %v1110 = vrsqrt.pop %v1109
        %v1111 = vmul.f32 %v1110, %v1109
        %v1112 = vmul.f32 %v1111, %v1110
        %v1113 = vmul.f32 0.5, %v1112
        %v1114 = vsub.f32 1.5, %v1113
        %v1115 = vmul.f32 %v1110, %v1114
        %vm1116 = vweird.f32 %v1109
        %vm1117 = vweird.f32 %v1110
        %vm1118 = vmor %vm1116, %vm1117
        %v1119 = vsel %vm1118, %v1110, %v1115
        %v1120 = vmul.f32 %v1103, %v1119
        %v1122 = vperm.slane %v1097, 0
        %v1124 = vmul.f32 %v1120, %v1122
        %v1126 = vperm.slane %v1098, 0
        %v1128 = vadd.f32 %v1124, %v1126
        %1129 = vst.msk [vmem:[%s519] sm:$0xff] %vm529, %v1128
        %s1130 = sand.u32 %s346, 1
        %s1131 = scalar_lea.sflag [#allocation4], %s1130
        %s1132 = sand.u32 %s346, 1
        %s1133 = smul.addr %s1132, 8
        %s1134 = scalar_lea.vmem [#allocation7], %s1133
        // Predicated region
        $region85: #{tpu_custom_call.1} parent=75 // pred_check
          %p1135 = pneg %p356
        $region86: #{tpu_custom_call.1} parent=75 // pred_check_branch
          %1137 = sbr.rel (%p1135) target = $region88
        $region87: #{tpu_custom_call.1} parent=75 // pred_region
          %1139 = vsyncadd %s1131, 0
          %s1140 = smul.addr %s34, 8
          %s1141 = scalar_lea.hbm %s14, %s1140
          %s1143 = sshll.u32 %s1134, 4
          %s1144 = int_to_ptr.vmem [resolvable:$true] %s1143
          %s1145 = sshll.u32 %s1141, 4
          %s1146 = int_to_ptr.hbm [resolvable:$true] %s1145
          %1148 = dma.vmem_to_hbm [thread:$0]  %s1144, 128, %s1146, %s1131
        $region88: #{tpu_custom_call.1} parent=75 // pred_fallthru
          _
      $region76: #{tpu_custom_call.1} parent=5 // pred_fallthru
        _
      %p1149 = scmp.le.s32.totalorder 2, %s29
      // Predicated region
      $region89: #{tpu_custom_call.1} parent=5 // pred_check
        %p1150 = pneg %p1149
      $region90: #{tpu_custom_call.1} parent=5 // pred_check_branch
        %1152 = sbr.rel (%p1150) target = $region92
      $region91: #{tpu_custom_call.1} parent=5 // pred_region
        %s1153 = ssub.s32 %s29, 2
        // Predicated region
        $region93: #{tpu_custom_call.1} parent=91 // pred_check
          %p1154 = pneg %p362
        $region94: #{tpu_custom_call.1} parent=91 // pred_check_branch
          %1156 = sbr.rel (%p1154) target = $region96
        $region95: #{tpu_custom_call.1} parent=91 // pred_region
          %s1157 = sand.u32 %s347, 1
          %s1158 = scalar_lea.sflag [#allocation4], %s1157
          %s1159 = sand.u32 %s347, 1
          %s1160 = smul.addr %s1159, 8
          %s1161 = scalar_lea.vmem [#allocation7], %s1160
          %1163 = dma.done %s1158, 128
        $region96: #{tpu_custom_call.1} parent=91 // pred_fallthru
          _
      $region92: #{tpu_custom_call.1} parent=5 // pred_fallthru
        _
    $region6: #{tpu_custom_call.1} parent=1 // loop_footer
      %s33 = sadd.s32 1, %s29
    $region7: #{tpu_custom_call.1} parent=1 // loop_footer_branch
      %28 = sbr.rel target = $region3
    $region8: #{tpu_custom_call.1} parent=1 // loop_exit
      _
    %1164 = vsyncpa [#allocation3], 1
    %s1165 = scalar_lea.sflag [#allocation3], 1
    %1166 = vsyncpa %s1165, 1
    %1167 = vsyncpa [#allocation6], 1
    %s1168 = scalar_lea.sflag [#allocation6], 1
    %1169 = vsyncpa %s1168, 1
    %1170 = vsyncpa [#allocation4], 1
    %s1171 = scalar_lea.sflag [#allocation4], 1
    %1172 = vsyncpa %s1171, 1

</llo_original>
